<compile_context>
chip_gen: v6e
topology: v6e:2x2x1
jax: 0.10.0
libtpu: 0.0.40
codegen_flags: <defaults>
</compile_context>

<pallas_src>
import functools

import jax
import jax.numpy as jnp
from jax.experimental import pallas as pl
from jax.experimental.pallas import tpu as pltpu


H1 = 128
H2 = 256


def _round_up(x, m):
    return ((x + m - 1) // m) * m


def _decoder_mlp_kernel(z_ref, w1_ref, b1_ref, w2_ref, b2_ref, w3_ref, b3_ref, out_ref):
    # z_ref:  (TM, latent_dim) f32
    # w1_ref: (latent_dim, 128) bf16, b1_ref: (1, 128)   f32
    # w2_ref: (128, 256)        bf16, b2_ref: (1, 256)   f32
    # w3_ref: (256, out_pad)    bf16, b3_ref: (1, out_pad) f32
    # out_ref:(TM, out_pad) f32  -- Bernoulli logits (lane-dense padded)
    z = z_ref[...].astype(jnp.bfloat16)
    h1 = jnp.dot(z, w1_ref[...], preferred_element_type=jnp.float32) + b1_ref[...]
    h1 = jnp.maximum(h1, 0.0).astype(jnp.bfloat16)
    h2 = jnp.dot(h1, w2_ref[...], preferred_element_type=jnp.float32) + b2_ref[...]
    h2 = jnp.maximum(h2, 0.0).astype(jnp.bfloat16)
    logits = jnp.dot(h2, w3_ref[...], preferred_element_type=jnp.float32) + b3_ref[...]
    out_ref[...] = logits.astype(out_ref.dtype)


def _reference_logits(z, p):
    """Plain-JAX (f32) decoder MLP — also used as the tiny-batch fallback path."""
    h1 = jnp.maximum(z @ p["w1"] + p["b1"], 0.0)
    h2 = jnp.maximum(h1 @ p["w2"] + p["b2"], 0.0)
    return h2 @ p["w3"] + p["b3"]


@functools.partial(jax.jit, static_argnames=("block_m", "min_kernel_batch"))
def bernoulli_decoder_logits(z, params, *, block_m=256, min_kernel_batch=64):
    """Compute Bernoulli logits = decoder_net(z) with a Pallas TPU kernel.

    z:      (B, latent_dim) float32
    params: dict with w1 (latent,128), b1 (1,128), w2 (128,256), b2 (1,256),
            w3 (256,out_dim), b3 (1,out_dim)  -- all float32
    returns (B, out_dim) float32 logits
    """
    B, latent_dim = z.shape
    out_dim = params["w3"].shape[1]

    # A pallas_call launch + pipeline prologue exceeds the actual work at tiny batch;
    # let XLA's fused dot chain handle that regime.
    if B < min_kernel_batch:
        return _reference_logits(z, params)

    # --- tiling: big batch tile (multiple of 8), lane-dense padded output ------------
    tm = _round_up(min(block_m, _round_up(B, 8)), 8)
    b_pad = _round_up(B, tm)
    out_pad = _round_up(out_dim, 128)

    z_p = z if b_pad == B else jnp.pad(z, ((0, b_pad - B), (0, 0)))

    # Weights to bf16 (MXU inputs, halved DMA bytes); biases stay f32 for the f32 add.
    w1 = params["w1"].astype(jnp.bfloat16)
    w2 = params["w2"].astype(jnp.bfloat16)
    w3 = params["w3"]
    b1 = params["b1"]
    b2 = params["b2"]
    b3 = params["b3"]
    if out_pad != out_dim:
        w3 = jnp.pad(w3, ((0, 0), (0, out_pad - out_dim)))
        b3 = jnp.pad(b3, ((0, 0), (0, out_pad - out_dim)))
    w3 = w3.astype(jnp.bfloat16)

    grid = (pl.cdiv(b_pad, tm),)

    # Weights are small and fully resident; constant index_map => DMA'd only once.
    full = lambda shape: pl.BlockSpec(shape, lambda i: (0, 0))

    out = pl.pallas_call(
        _decoder_mlp_kernel,
        out_shape=jax.ShapeDtypeStruct((b_pad, out_pad), jnp.float32),
        grid_spec=pltpu.PrefetchScalarGridSpec(
            num_scalar_prefetch=0,
            grid=grid,
            in_specs=[
                pl.BlockSpec((tm, latent_dim), lambda i: (i, 0)),   # z tile
                full((latent_dim, H1)),
                full((1, H1)),
                full((H1, H2)),
                full((1, H2)),
                full((H2, out_pad)),
                full((1, out_pad)),
            ],
            out_specs=pl.BlockSpec((tm, out_pad), lambda i: (i, 0)),
        ),
        compiler_params=pltpu.CompilerParams(
            # Single batch axis is parallel -> shards across v7x's 2 TensorCores.
            dimension_semantics=("parallel",),
        ),
    )(z_p, w1, b1, w2, b2, w3, b3)

    return out[:B, :out_dim]


def init_params(key, latent_dim, out_dim):
    """Deterministic synthetic init (PyTorch-like uniform fan-in scaling)."""
    ks = jax.random.split(key, 6)

    def linear(kw, kb, fan_in, fan_out):
        bound = 1.0 / jnp.sqrt(fan_in)
        w = jax.random.uniform(kw, (fan_in, fan_out), jnp.float32, -bound, bound)
        b = jax.random.uniform(kb, (1, fan_out), jnp.float32, -bound, bound)
        return w, b

    w1, b1 = linear(ks[0], ks[1], latent_dim, H1)
    w2, b2 = linear(ks[2], ks[3], H1, H2)
    w3, b3 = linear(ks[4], ks[5], H2, out_dim)
    return dict(w1=w1, b1=b1, w2=w2, b2=b2, w3=w3, b3=b3)


if __name__ == "__main__":
    key = jax.random.PRNGKey(0)
    k_param, k_z = jax.random.split(key)

    batch = 512          # big enough to exercise the kernel path (grid = 2 with tm=256)
    latent_dim = 32
    out_dim = 784        # e.g. flattened 28x28 image; padded to 896 inside the wrapper

    params = init_params(k_param, latent_dim, out_dim)
    z = jax.random.normal(k_z, (batch, latent_dim), jnp.float32)

    logits = bernoulli_decoder_logits(z, params)
    logits = jax.block_until_ready(logits)

    ref = _reference_logits(z, params)
    assert logits.shape == (batch, out_dim)
    # bf16 MXU inputs with f32 accumulation -> loosen tolerance vs the f32 reference.
    assert jnp.allclose(logits, ref, atol=5e-2, rtol=5e-2), (
        "mismatch vs reference; max abs err = "
        + str(float(jnp.max(jnp.abs(logits - ref)))))

    # TODO(synk): td.Independent(td.Bernoulli(...), 2) distribution object has no kernel
    # equivalent; downstream log_prob/sample can be built from these logits in plain JAX.
    print("KERNEL_OK")
</pallas_src>

<mosaic_0001>
module attributes {stable_mosaic.version = 11 : i64} {
  func.func @_decoder_mlp_kernel(%arg0: i32, %arg1: memref<256x32xf32, #tpu.memory_space<vmem>>, %arg2: memref<32x128xbf16, #tpu.memory_space<vmem>>, %arg3: memref<1x128xf32, #tpu.memory_space<vmem>>, %arg4: memref<128x256xbf16, #tpu.memory_space<vmem>>, %arg5: memref<1x256xf32, #tpu.memory_space<vmem>>, %arg6: memref<256x896xbf16, #tpu.memory_space<vmem>>, %arg7: memref<1x896xf32, #tpu.memory_space<vmem>>, %arg8: memref<256x896xf32, #tpu.memory_space<vmem>>) attributes {dimension_semantics = [#tpu.dimension_semantics<parallel>], iteration_bounds = array<i64: 2>, scalar_prefetch = 0 : i64, scratch_operands = 0 : i64, tpu.core_type = #tpu.core_type<tc>, window_params = [{transform_indices = @transform_0, window_bounds = array<i64: 256, 32>}, {pipeline_mode = #tpu.pipeline_mode<synchronous>, transform_indices = @transform_1, window_bounds = array<i64: 32, 128>}, {pipeline_mode = #tpu.pipeline_mode<synchronous>, transform_indices = @transform_2, window_bounds = array<i64: 1, 128>}, {pipeline_mode = #tpu.pipeline_mode<synchronous>, transform_indices = @transform_3, window_bounds = array<i64: 128, 256>}, {pipeline_mode = #tpu.pipeline_mode<synchronous>, transform_indices = @transform_4, window_bounds = array<i64: 1, 256>}, {pipeline_mode = #tpu.pipeline_mode<synchronous>, transform_indices = @transform_5, window_bounds = array<i64: 256, 896>}, {pipeline_mode = #tpu.pipeline_mode<synchronous>, transform_indices = @transform_6, window_bounds = array<i64: 1, 896>}, {transform_indices = @transform_7, window_bounds = array<i64: 256, 896>}]} {
    %c0 = arith.constant 0 : index
    %c0_0 = arith.constant 0 : index
    %0 = vector.load %arg1[%c0, %c0_0] : memref<256x32xf32, #tpu.memory_space<vmem>>, vector<256x32xf32>
    %1 = arith.truncf %0 : vector<256x32xf32> to vector<256x32xbf16>
    %c0_1 = arith.constant 0 : index
    %c0_2 = arith.constant 0 : index
    %2 = vector.load %arg2[%c0_1, %c0_2] : memref<32x128xbf16, #tpu.memory_space<vmem>>, vector<32x128xbf16>
    %cst = arith.constant dense<0.000000e+00> : vector<256x128xf32>
    %3 = tpu.matmul %1, %2, %cst {dimension_numbers = #tpu.dot_dimension_numbers<[1], [0], [0], [1], [0, 0, 1, 1], [], []>} : vector<256x32xbf16>, vector<32x128xbf16>, vector<256x128xf32> -> vector<256x128xf32>
    %c0_3 = arith.constant 0 : index
    %c0_4 = arith.constant 0 : index
    %4 = vector.load %arg3[%c0_3, %c0_4] : memref<1x128xf32, #tpu.memory_space<vmem>>, vector<1x128xf32>
    %5 = vector.broadcast %4 : vector<1x128xf32> to vector<256x128xf32>
    %6 = arith.addf %3, %5 : vector<256x128xf32>
    %cst_5 = arith.constant 0.000000e+00 : f32
    %7 = vector.broadcast %cst_5 : f32 to vector<256x128xf32>
    %8 = arith.maximumf %6, %7 : vector<256x128xf32>
    %9 = arith.truncf %8 : vector<256x128xf32> to vector<256x128xbf16>
    %c0_6 = arith.constant 0 : index
    %c0_7 = arith.constant 0 : index
    %10 = vector.load %arg4[%c0_6, %c0_7] : memref<128x256xbf16, #tpu.memory_space<vmem>>, vector<128x256xbf16>
    %cst_8 = arith.constant dense<0.000000e+00> : vector<256x256xf32>
    %11 = tpu.matmul %9, %10, %cst_8 {dimension_numbers = #tpu.dot_dimension_numbers<[1], [0], [0], [1], [0, 0, 1, 1], [], []>} : vector<256x128xbf16>, vector<128x256xbf16>, vector<256x256xf32> -> vector<256x256xf32>
    %c0_9 = arith.constant 0 : index
    %c0_10 = arith.constant 0 : index
    %12 = vector.load %arg5[%c0_9, %c0_10] : memref<1x256xf32, #tpu.memory_space<vmem>>, vector<1x256xf32>
    %13 = vector.broadcast %12 : vector<1x256xf32> to vector<256x256xf32>
    %14 = arith.addf %11, %13 : vector<256x256xf32>
    %cst_11 = arith.constant 0.000000e+00 : f32
    %15 = vector.broadcast %cst_11 : f32 to vector<256x256xf32>
    %16 = arith.maximumf %14, %15 : vector<256x256xf32>
    %17 = arith.truncf %16 : vector<256x256xf32> to vector<256x256xbf16>
    %c0_12 = arith.constant 0 : index
    %c0_13 = arith.constant 0 : index
    %18 = vector.load %arg6[%c0_12, %c0_13] : memref<256x896xbf16, #tpu.memory_space<vmem>>, vector<256x896xbf16>
    %cst_14 = arith.constant dense<0.000000e+00> : vector<256x896xf32>
    %19 = tpu.matmul %17, %18, %cst_14 {dimension_numbers = #tpu.dot_dimension_numbers<[1], [0], [0], [1], [0, 0, 1, 1], [], []>} : vector<256x256xbf16>, vector<256x896xbf16>, vector<256x896xf32> -> vector<256x896xf32>
    %c0_15 = arith.constant 0 : index
    %c0_16 = arith.constant 0 : index
    %20 = vector.load %arg7[%c0_15, %c0_16] : memref<1x896xf32, #tpu.memory_space<vmem>>, vector<1x896xf32>
    %21 = vector.broadcast %20 : vector<1x896xf32> to vector<256x896xf32>
    %22 = arith.addf %19, %21 : vector<256x896xf32>
    %c0_17 = arith.constant 0 : index
    %c0_18 = arith.constant 0 : index
    %23 = vector.load %arg8[%c0_17, %c0_18] : memref<256x896xf32, #tpu.memory_space<vmem>>, vector<256x896xf32>
    tpu.vector_store %arg8[%c0_17, %c0_18], %22 {strides = array<i32>} : memref<256x896xf32, #tpu.memory_space<vmem>>, vector<256x896xf32>,
    return
  }
  func.func @transform_0(%arg0: i32) -> (i32, i32) {
    %c0_i32 = arith.constant 0 : i32
    %c0_i32_0 = arith.constant 0 : i32
    return %arg0, %c0_i32 : i32, i32
  }
  func.func @transform_1(%arg0: i32) -> (i32, i32) {
    %c0_i32 = arith.constant 0 : i32
    %c0_i32_0 = arith.constant 0 : i32
    %c0_i32_1 = arith.constant 0 : i32
    return %c0_i32, %c0_i32_0 : i32, i32
  }
  func.func @transform_2(%arg0: i32) -> (i32, i32) {
    %c0_i32 = arith.constant 0 : i32
    %c0_i32_0 = arith.constant 0 : i32
    %c0_i32_1 = arith.constant 0 : i32
    return %c0_i32, %c0_i32_0 : i32, i32
  }
  func.func @transform_3(%arg0: i32) -> (i32, i32) {
    %c0_i32 = arith.constant 0 : i32
    %c0_i32_0 = arith.constant 0 : i32
    %c0_i32_1 = arith.constant 0 : i32
    return %c0_i32, %c0_i32_0 : i32, i32
  }
  func.func @transform_4(%arg0: i32) -> (i32, i32) {
    %c0_i32 = arith.constant 0 : i32
    %c0_i32_0 = arith.constant 0 : i32
    %c0_i32_1 = arith.constant 0 : i32
    return %c0_i32, %c0_i32_0 : i32, i32
  }
  func.func @transform_5(%arg0: i32) -> (i32, i32) {
    %c0_i32 = arith.constant 0 : i32
    %c0_i32_0 = arith.constant 0 : i32
    %c0_i32_1 = arith.constant 0 : i32
    return %c0_i32, %c0_i32_0 : i32, i32
  }
  func.func @transform_6(%arg0: i32) -> (i32, i32) {
    %c0_i32 = arith.constant 0 : i32
    %c0_i32_0 = arith.constant 0 : i32
    %c0_i32_1 = arith.constant 0 : i32
    return %c0_i32, %c0_i32_0 : i32, i32
  }
  func.func @transform_7(%arg0: i32) -> (i32, i32) {
    %c0_i32 = arith.constant 0 : i32
    %c0_i32_0 = arith.constant 0 : i32
    return %arg0, %c0_i32 : i32, i32
  }
}

</mosaic_0001>

<llo_original>
// kernel: bernoulli_decoder_logits.1
$region0: #{bernoulli_decoder_logits.1}
  #allocation0 [shape = 'u32[]', space=smem, size = 0x4, offset = 0x4, fixed_abs, tag = 'smem constant byte address 0x4 - core index']
  #allocation1 [shape = 'u32[144,128]{1,0:T(1,128)}', space=vmem, size = 0x12000, scoped, tag = 'internal scratch']
  %s0 = inlined_call_operand.vmem [shape: f32[512,32], index: 0, kind: input, shape index: {}]
  %s1 = inlined_call_operand.vmem [shape: bf16[32,128], index: 1, kind: input, shape index: {}]
  %s2 = inlined_call_operand.vmem [shape: f32[1,128], index: 2, kind: input, shape index: {}]
  %s3 = inlined_call_operand.vmem [shape: bf16[128,256], index: 3, kind: input, shape index: {}]
  %s4 = inlined_call_operand.vmem [shape: f32[1,256], index: 4, kind: input, shape index: {}]
  %s5 = inlined_call_operand.vmem [shape: bf16[256,896], index: 5, kind: input, shape index: {}]
  %s6 = inlined_call_operand.vmem [shape: f32[1,896], index: 6, kind: input, shape index: {}]
  %s7 = inlined_call_operand.vmem [shape: f32[512,896], index: 7, kind: output, shape index: {}]
  %s8 = sld [smem:[#allocation0]]
  $region61: #{bernoulli_decoder_logits.1} parent=0
    _
  %s10 = ssub.s32 1, %s8
  %s11 = scalar_select 0, %s10, %s8
  loop: start=0, step=1, limit=4
  $region2: #{bernoulli_decoder_logits.1} parent=0 // loop_pre_header
    _
  $region3: #{bernoulli_decoder_logits.1} parent=0 // loop_header
    %s13 = sphi 0, %s17
    %p14 = scmp.ge.s32.totalorder %s13, 4
    %s23 = sphi 0, %s25
    %s26 = sphi 0, %s23
    %s27 = sphi 0, %s26
    %s43 = sphi 0, %s27
    %s47 = sphi 0, %s47
    %s49 = sphi 0, %s47
    %s50 = sphi 0, %s49
    %s64 = sphi 0, %s50
    %s68 = sphi 0, %s68
    %s70 = sphi 0, %s68
    %s71 = sphi 0, %s70
    %s85 = sphi 0, %s71
    %s89 = sphi 0, %s89
    %s91 = sphi 0, %s89
    %s92 = sphi 0, %s91
    %s106 = sphi 0, %s92
    %s110 = sphi 0, %s110
    %s112 = sphi 0, %s110
    %s113 = sphi 0, %s112
    %s127 = sphi 0, %s113
    %s131 = sphi 0, %s131
    %s133 = sphi 0, %s131
    %s134 = sphi 0, %s133
    %s148 = sphi 0, %s134
    %s152 = sphi 0, %s152
    %s154 = sphi 0, %s152
    %s155 = sphi 0, %s154
    %s169 = sphi 0, %s155
    %s175 = sphi 0, %s177
    %s178 = sphi 0, %s175
    %s179 = sphi 0, %s178
    %s195 = sphi 0, %s179
  $region4: #{bernoulli_decoder_logits.1} parent=0 // loop_header_branch
    %16 = sbr.rel (%p14) target = $region8
  $region5: #{bernoulli_decoder_logits.1} parent=0 // loop_body
    %s18 = ssub.s32 %s13, 1
    %s19 = ssub.s32 %s13, 2
    %s20 = sadd.s32 %s13, 1
    %s21 = ssub.s32 %s13, %s20
    %p22 = scmp.eq.s32.totalorder %s21, 0
    %s24 = sadd.s32 %s23, 1
    %s25 = scalar_select %p22, %s23, %s24
    %p28 = pneg %p22
    %p29 = scmp.eq.s32.totalorder %s13, 1
    %p30 = por %p28, %p29
    %p31 = scmp.ne.s32.totalorder %s23, %s26
    %p32 = scmp.eq.s32.totalorder %s13, 0
    %p33 = por %p31, %p32
    %p34 = scmp.ne.s32.totalorder %s23, %s26
    %p35 = scmp.eq.s32.totalorder %s18, 1
    %p36 = por %p34, %p35
    %p37 = scmp.ne.s32.totalorder %s26, %s27
    %p38 = scmp.eq.s32.totalorder %s18, 0
    %p39 = por %p37, %p38
    %p40 = scmp.ne.s32.totalorder %s26, %s27
    %p41 = scmp.eq.s32.totalorder %s19, 1
    %p42 = por %p40, %p41
    %p44 = scmp.ne.s32.totalorder %s27, %s43
    %p45 = scmp.eq.s32.totalorder %s19, 0
    %p46 = por %p44, %p45
    %s48 = sadd.s32 %s47, 1
    %p51 = scmp.eq.s32.totalorder %s13, 1
    %p52 = scmp.ne.s32.totalorder %s47, %s49
    %p53 = scmp.eq.s32.totalorder %s13, 0
    %p54 = por %p52, %p53
    %p55 = scmp.ne.s32.totalorder %s47, %s49
    %p56 = scmp.eq.s32.totalorder %s18, 1
    %p57 = por %p55, %p56
    %p58 = scmp.ne.s32.totalorder %s49, %s50
    %p59 = scmp.eq.s32.totalorder %s18, 0
    %p60 = por %p58, %p59
    %p61 = scmp.ne.s32.totalorder %s49, %s50
    %p62 = scmp.eq.s32.totalorder %s19, 1
    %p63 = por %p61, %p62
    %p65 = scmp.ne.s32.totalorder %s50, %s64
    %p66 = scmp.eq.s32.totalorder %s19, 0
    %p67 = por %p65, %p66
    %s69 = sadd.s32 %s68, 1
    %p72 = scmp.eq.s32.totalorder %s13, 1
    %p73 = scmp.ne.s32.totalorder %s68, %s70
    %p74 = scmp.eq.s32.totalorder %s13, 0
    %p75 = por %p73, %p74
    %p76 = scmp.ne.s32.totalorder %s68, %s70
    %p77 = scmp.eq.s32.totalorder %s18, 1
    %p78 = por %p76, %p77
    %p79 = scmp.ne.s32.totalorder %s70, %s71
    %p80 = scmp.eq.s32.totalorder %s18, 0
    %p81 = por %p79, %p80
    %p82 = scmp.ne.s32.totalorder %s70, %s71
    %p83 = scmp.eq.s32.totalorder %s19, 1
    %p84 = por %p82, %p83
    %p86 = scmp.ne.s32.totalorder %s71, %s85
    %p87 = scmp.eq.s32.totalorder %s19, 0
    %p88 = por %p86, %p87
    %s90 = sadd.s32 %s89, 1
    %p93 = scmp.eq.s32.totalorder %s13, 1
    %p94 = scmp.ne.s32.totalorder %s89, %s91
    %p95 = scmp.eq.s32.totalorder %s13, 0
    %p96 = por %p94, %p95
    %p97 = scmp.ne.s32.totalorder %s89, %s91
    %p98 = scmp.eq.s32.totalorder %s18, 1
    %p99 = por %p97, %p98
    %p100 = scmp.ne.s32.totalorder %s91, %s92
    %p101 = scmp.eq.s32.totalorder %s18, 0
    %p102 = por %p100, %p101
    %p103 = scmp.ne.s32.totalorder %s91, %s92
    %p104 = scmp.eq.s32.totalorder %s19, 1
    %p105 = por %p103, %p104
    %p107 = scmp.ne.s32.totalorder %s92, %s106
    %p108 = scmp.eq.s32.totalorder %s19, 0
    %p109 = por %p107, %p108
    %s111 = sadd.s32 %s110, 1
    %p114 = scmp.eq.s32.totalorder %s13, 1
    %p115 = scmp.ne.s32.totalorder %s110, %s112
    %p116 = scmp.eq.s32.totalorder %s13, 0
    %p117 = por %p115, %p116
    %p118 = scmp.ne.s32.totalorder %s110, %s112
    %p119 = scmp.eq.s32.totalorder %s18, 1
    %p120 = por %p118, %p119
    %p121 = scmp.ne.s32.totalorder %s112, %s113
    %p122 = scmp.eq.s32.totalorder %s18, 0
    %p123 = por %p121, %p122
    %p124 = scmp.ne.s32.totalorder %s112, %s113
    %p125 = scmp.eq.s32.totalorder %s19, 1
    %p126 = por %p124, %p125
    %p128 = scmp.ne.s32.totalorder %s113, %s127
    %p129 = scmp.eq.s32.totalorder %s19, 0
    %p130 = por %p128, %p129
    %s132 = sadd.s32 %s131, 1
    %p135 = scmp.eq.s32.totalorder %s13, 1
    %p136 = scmp.ne.s32.totalorder %s131, %s133
    %p137 = scmp.eq.s32.totalorder %s13, 0
    %p138 = por %p136, %p137
    %p139 = scmp.ne.s32.totalorder %s131, %s133
    %p140 = scmp.eq.s32.totalorder %s18, 1
    %p141 = por %p139, %p140
    %p142 = scmp.ne.s32.totalorder %s133, %s134
    %p143 = scmp.eq.s32.totalorder %s18, 0
    %p144 = por %p142, %p143
    %p145 = scmp.ne.s32.totalorder %s133, %s134
    %p146 = scmp.eq.s32.totalorder %s19, 1
    %p147 = por %p145, %p146
    %p149 = scmp.ne.s32.totalorder %s134, %s148
    %p150 = scmp.eq.s32.totalorder %s19, 0
    %p151 = por %p149, %p150
    %s153 = sadd.s32 %s152, 1
    %p156 = scmp.eq.s32.totalorder %s13, 1
    %p157 = scmp.ne.s32.totalorder %s152, %s154
    %p158 = scmp.eq.s32.totalorder %s13, 0
    %p159 = por %p157, %p158
    %p160 = scmp.ne.s32.totalorder %s152, %s154
    %p161 = scmp.eq.s32.totalorder %s18, 1
    %p162 = por %p160, %p161
    %p163 = scmp.ne.s32.totalorder %s154, %s155
    %p164 = scmp.eq.s32.totalorder %s18, 0
    %p165 = por %p163, %p164
    %p166 = scmp.ne.s32.totalorder %s154, %s155
    %p167 = scmp.eq.s32.totalorder %s19, 1
    %p168 = por %p166, %p167
    %p170 = scmp.ne.s32.totalorder %s155, %s169
    %p171 = scmp.eq.s32.totalorder %s19, 0
    %p172 = por %p170, %p171
    %s173 = ssub.s32 %s13, %s20
    %p174 = scmp.eq.s32.totalorder %s173, 0
    %s176 = sadd.s32 %s175, 1
    %s177 = scalar_select %p174, %s175, %s176
    %p180 = pneg %p174
    %p181 = scmp.eq.s32.totalorder %s13, 1
    %p182 = por %p180, %p181
    %p183 = scmp.ne.s32.totalorder %s175, %s178
    %p184 = scmp.eq.s32.totalorder %s13, 0
    %p185 = por %p183, %p184
    %p186 = scmp.ne.s32.totalorder %s175, %s178
    %p187 = scmp.eq.s32.totalorder %s18, 1
    %p188 = por %p186, %p187
    %p189 = scmp.ne.s32.totalorder %s178, %s179
    %p190 = scmp.eq.s32.totalorder %s18, 0
    %p191 = por %p189, %p190
    %p192 = scmp.ne.s32.totalorder %s178, %s179
    %p193 = scmp.eq.s32.totalorder %s19, 1
    %p194 = por %p192, %p193
    %p196 = scmp.ne.s32.totalorder %s179, %s195
    %p197 = scmp.eq.s32.totalorder %s19, 0
    %p198 = por %p196, %p197
    %p199 = scmp.le.s32.totalorder 1, %s13
    %p200 = scmp.lt.s32.totalorder %s13, 3
    %p201 = pnand %p199, %p200
    %p202 = pneg %p201
    // Predicated region
    $region9: #{bernoulli_decoder_logits.1} parent=5 // pred_check
      _
    $region10: #{bernoulli_decoder_logits.1} parent=5 // pred_check_branch
      %204 = sbr.rel (%p201) target = $region12
    $region11: #{bernoulli_decoder_logits.1} parent=5 // pred_region
      %s205 = ssub.s32 %s13, 1
      // Predicated region
      $region13: #{bernoulli_decoder_logits.1} parent=11 // pred_check
        %p206 = pneg %p60
      $region14: #{bernoulli_decoder_logits.1} parent=11 // pred_check_branch
        %208 = sbr.rel (%p206) target = $region16
      $region15: #{bernoulli_decoder_logits.1} parent=11 // pred_region
        _
      $region16: #{bernoulli_decoder_logits.1} parent=11 // pred_fallthru
        _
      // Predicated region
      $region17: #{bernoulli_decoder_logits.1} parent=11 // pred_check
        %p209 = pneg %p81
      $region18: #{bernoulli_decoder_logits.1} parent=11 // pred_check_branch
        %211 = sbr.rel (%p209) target = $region20
      $region19: #{bernoulli_decoder_logits.1} parent=11 // pred_region
        _
      $region20: #{bernoulli_decoder_logits.1} parent=11 // pred_fallthru
        _
      // Predicated region
      $region21: #{bernoulli_decoder_logits.1} parent=11 // pred_check
        %p212 = pneg %p102
      $region22: #{bernoulli_decoder_logits.1} parent=11 // pred_check_branch
        %214 = sbr.rel (%p212) target = $region24
      $region23: #{bernoulli_decoder_logits.1} parent=11 // pred_region
        _
      $region24: #{bernoulli_decoder_logits.1} parent=11 // pred_fallthru
        _
      // Predicated region
      $region25: #{bernoulli_decoder_logits.1} parent=11 // pred_check
        %p215 = pneg %p123
      $region26: #{bernoulli_decoder_logits.1} parent=11 // pred_check_branch
        %217 = sbr.rel (%p215) target = $region28
      $region27: #{bernoulli_decoder_logits.1} parent=11 // pred_region
        _
      $region28: #{bernoulli_decoder_logits.1} parent=11 // pred_fallthru
        _
      // Predicated region
      $region29: #{bernoulli_decoder_logits.1} parent=11 // pred_check
        %p218 = pneg %p144
      $region30: #{bernoulli_decoder_logits.1} parent=11 // pred_check_branch
        %220 = sbr.rel (%p218) target = $region32
      $region31: #{bernoulli_decoder_logits.1} parent=11 // pred_region
        _
      $region32: #{bernoulli_decoder_logits.1} parent=11 // pred_fallthru
        _
      // Predicated region
      $region33: #{bernoulli_decoder_logits.1} parent=11 // pred_check
        %p221 = pneg %p165
      $region34: #{bernoulli_decoder_logits.1} parent=11 // pred_check_branch
        %223 = sbr.rel (%p221) target = $region36
      $region35: #{bernoulli_decoder_logits.1} parent=11 // pred_region
        _
      $region36: #{bernoulli_decoder_logits.1} parent=11 // pred_fallthru
        _
    $region12: #{bernoulli_decoder_logits.1} parent=5 // pred_fallthru
      _
    %p224 = scmp.lt.s32.totalorder %s13, 2
    // Predicated region
    $region37: #{bernoulli_decoder_logits.1} parent=5 // pred_check
      %p225 = pneg %p224
    $region38: #{bernoulli_decoder_logits.1} parent=5 // pred_check_branch
      %227 = sbr.rel (%p225) target = $region40
    $region39: #{bernoulli_decoder_logits.1} parent=5 // pred_region
      // Predicated region
      $region41: #{bernoulli_decoder_logits.1} parent=39 // pred_check
        %p228 = pneg %p33
      $region42: #{bernoulli_decoder_logits.1} parent=39 // pred_check_branch
        %230 = sbr.rel (%p228) target = $region44
      $region43: #{bernoulli_decoder_logits.1} parent=39 // pred_region
        %s231 = smul.u32 32, %s13
        %p232 = scmp.lt.s32.totalorder %s231, 63
        %s233 = scalar_select %p232, %s231, 63
        %s234 = smul.addr %s233, 8
        %s235 = scalar_lea.vmem %s0, %s234
        %s236 = smul.u32 32, %s13
      $region44: #{bernoulli_decoder_logits.1} parent=39 // pred_fallthru
        _
    $region40: #{bernoulli_decoder_logits.1} parent=5 // pred_fallthru
      _
    %p237 = scmp.le.s32.totalorder 1, %s13
    %p238 = scmp.lt.s32.totalorder %s13, 3
    %p239 = pnand %p237, %p238
    %p240 = pneg %p239
    // Predicated region
    $region45: #{bernoulli_decoder_logits.1} parent=5 // pred_check
      _
    $region46: #{bernoulli_decoder_logits.1} parent=5 // pred_check_branch
      %242 = sbr.rel (%p239) target = $region48
    $region47: #{bernoulli_decoder_logits.1} parent=5 // pred_region
      %s243 = ssub.s32 %s13, 1
      %s244 = smul.u32 32, %s18
      %p245 = scmp.lt.s32.totalorder %s244, 63
      %s246 = scalar_select %p245, %s244, 63
      %s247 = smul.addr %s246, 8
      %s248 = scalar_lea.vmem %s0, %s247
      %p249 = pneg %p39
      %p250 = pneg %p36
      %p251 = pneg %p60
      %p252 = pneg %p57
      %p253 = pneg %p81
      %p254 = pneg %p78
      %p255 = pneg %p102
      %p256 = pneg %p99
      %p257 = pneg %p123
      %p258 = pneg %p120
      %p259 = pneg %p144
      %p260 = pneg %p141
      %p261 = pneg %p165
      %p262 = pneg %p162
      %p263 = pneg %p191
      %p264 = pneg %p188
      %s265 = smul.u32 32, %s18
      %p266 = scmp.lt.s32.totalorder %s265, 63
      %s267 = scalar_select %p266, %s265, 63
      %s268 = smul.addr %s267, 7
      %s269 = smul.addr %s268, 8
      %s270 = scalar_lea.vmem %s7, %s269
      %s271 = smul.u32 32, %s18
      %p272 = scmp.lt.s32.totalorder %s271, 63
      %s273 = scalar_select %p272, %s271, 63
      %s274 = smul.addr %s273, 8
      %s275 = scalar_lea.vmem %s0, %s274
      %s276 = smul.u32 32, %s18
      %s277 = smul.u32 32, %s18
      %p278 = scmp.lt.s32.totalorder %s277, 63
      %s279 = scalar_select %p278, %s277, 63
      %s280 = smul.addr %s279, 7
      %s281 = smul.addr %s280, 8
      %s282 = scalar_lea.vmem %s7, %s281
      %s283 = smul.u32 32, %s18
      %v285 = vld [vmem:[%s275] sm:$0xff]
      %v286 = vld [vmem:[%s275 + $0x8] sm:$0xff]
      %v287 = vld [vmem:[%s275 + $0x10] sm:$0xff]
      %v288 = vld [vmem:[%s275 + $0x18] sm:$0xff]
      %v289 = vld [vmem:[%s275 + $0x20] sm:$0xff]
      %v290 = vld [vmem:[%s275 + $0x28] sm:$0xff]
      %v291 = vld [vmem:[%s275 + $0x30] sm:$0xff]
      %v292 = vld [vmem:[%s275 + $0x38] sm:$0xff]
      %v293 = vld [vmem:[%s275 + $0x40] sm:$0xff]
      %v294 = vld [vmem:[%s275 + $0x48] sm:$0xff]
      %v295 = vld [vmem:[%s275 + $0x50] sm:$0xff]
      %v296 = vld [vmem:[%s275 + $0x58] sm:$0xff]
      %v297 = vld [vmem:[%s275 + $0x60] sm:$0xff]
      %v298 = vld [vmem:[%s275 + $0x68] sm:$0xff]
      %v299 = vld [vmem:[%s275 + $0x70] sm:$0xff]
      %v300 = vld [vmem:[%s275 + $0x78] sm:$0xff]
      %v301 = vld [vmem:[%s275 + $0x80] sm:$0xff]
      %v302 = vld [vmem:[%s275 + $0x88] sm:$0xff]
      %v303 = vld [vmem:[%s275 + $0x90] sm:$0xff]
      %v304 = vld [vmem:[%s275 + $0x98] sm:$0xff]
      %v305 = vld [vmem:[%s275 + $0xa0] sm:$0xff]
      %v306 = vld [vmem:[%s275 + $0xa8] sm:$0xff]
      %v307 = vld [vmem:[%s275 + $0xb0] sm:$0xff]
      %v308 = vld [vmem:[%s275 + $0xb8] sm:$0xff]
      %v309 = vld [vmem:[%s275 + $0xc0] sm:$0xff]
      %v310 = vld [vmem:[%s275 + $0xc8] sm:$0xff]
      %v311 = vld [vmem:[%s275 + $0xd0] sm:$0xff]
      %v312 = vld [vmem:[%s275 + $0xd8] sm:$0xff]
      %v313 = vld [vmem:[%s275 + $0xe0] sm:$0xff]
      %v314 = vld [vmem:[%s275 + $0xe8] sm:$0xff]
      %v315 = vld [vmem:[%s275 + $0xf0] sm:$0xff]
      %v316 = vld [vmem:[%s275 + $0xf8] sm:$0xff]
      %v317 = vpack.c.bf16 %v286, %v285
      %v318 = vpack.c.bf16 %v288, %v287
      %v319 = vpack.c.bf16 %v290, %v289
      %v320 = vpack.c.bf16 %v292, %v291
      %v321 = vpack.c.bf16 %v294, %v293
      %v322 = vpack.c.bf16 %v296, %v295
      %v323 = vpack.c.bf16 %v298, %v297
      %v324 = vpack.c.bf16 %v300, %v299
      %v325 = vpack.c.bf16 %v302, %v301
      %v326 = vpack.c.bf16 %v304, %v303
      %v327 = vpack.c.bf16 %v306, %v305
      %v328 = vpack.c.bf16 %v308, %v307
      %v329 = vpack.c.bf16 %v310, %v309
      %v330 = vpack.c.bf16 %v312, %v311
      %v331 = vpack.c.bf16 %v314, %v313
      %v332 = vpack.c.bf16 %v316, %v315
      %v333 = vld [vmem:[%s1] sm:$0xf]
      %v334 = vld [vmem:[%s1 + $0x4] sm:$0xf]
      %v335 = vld [vmem:[%s1 + $0x8] sm:$0xf]
      %v336 = vld [vmem:[%s1 + $0xc] sm:$0xf]
      %v337 = vld [vmem:[%s2] sm:$0x1]
      %v339 = vlaneseq
      %v340 = vshrl.u32 %v339, 7
      %v341 = vsub.s32 0, %v340
      %v342 = vrot.slane %v337, %v341
      %v348 = vunpack.c.l.b16 %v333
      %v349 = vunpack.c.l.b16 %v334
      %v350 = vunpack.c.l.b16 %v335
      %v351 = vunpack.c.l.b16 %v336
      %v352 = vpack.c.b16 %v349, %v348
      %v353 = vpack.c.b16 %v351, %v350
      %vm356 = vcmask 261120
      %v358 = vsel %vm356, %v317, 0
      %v361 = vsel %vm356, %v318, 0
      %v364 = vsel %vm356, %v319, 0
      %v367 = vsel %vm356, %v320, 0
      %v370 = vsel %vm356, %v321, 0
      %v373 = vsel %vm356, %v322, 0
      %v376 = vsel %vm356, %v323, 0
      %v379 = vsel %vm356, %v324, 0
      %v382 = vsel %vm356, %v325, 0
      %v385 = vsel %vm356, %v326, 0
      %v388 = vsel %vm356, %v327, 0
      %v391 = vsel %vm356, %v328, 0
      %v394 = vsel %vm356, %v329, 0
      %v397 = vsel %vm356, %v330, 0
      %v400 = vsel %vm356, %v331, 0
      %v403 = vsel %vm356, %v332, 0
      %405 = vmatprep.subr.bf16.mxu0 0
      %406 = vmatpush1.bf16.msra.mxu0 0
      %407 = vmatprep.subr.bf16.mxu0 0
      %408 = vmatpush1.bf16.msra.mxu0 0
      %409 = vmatprep.subr.bf16.mxu0 0
      %410 = vmatpush1.bf16.msra.mxu0 0
      %411 = vmatprep.subr.bf16.mxu0 0
      %412 = vmatpush1.bf16.msra.mxu0 0
      %413 = vmatprep.subr.bf16.mxu0 0
      %414 = vmatpush1.bf16.msra.mxu0 0
      %415 = vmatprep.subr.bf16.mxu0 0
      %416 = vmatpush1.bf16.msra.mxu0 0
      %417 = vmatprep.subr.bf16.mxu0 0
      %418 = vmatpush1.bf16.msra.mxu0 %v353
      %419 = vmatprep.subr.bf16.mxu0 0
      %420 = vmatpush1.bf16.msra.mxu0 %v352
      %421 = vmatprep.subr.bf16.mxu0 0
      %422 = vmatpush2.bf16.msra.mxu0 0
      %423 = vmatprep.subr.bf16.mxu0 0
      %424 = vmatpush2.bf16.msra.mxu0 0
      %425 = vmatprep.subr.bf16.mxu0 0
      %426 = vmatpush2.bf16.msra.mxu0 0
      %427 = vmatprep.subr.bf16.mxu0 0
      %428 = vmatpush2.bf16.msra.mxu0 0
      %429 = vmatprep.subr.bf16.mxu0 0
      %430 = vmatpush2.bf16.msra.mxu0 0
      %431 = vmatprep.subr.bf16.mxu0 0
      %432 = vmatpush2.bf16.msra.mxu0 0
      %433 = vmatprep.subr.bf16.mxu0 0
      %434 = vmatpush2.bf16.msra.mxu0 0
      %435 = vmatprep.subr.bf16.mxu0 0
      %436 = vmatpush2.bf16.msra.mxu0 0
      %437 = vmatprep.mubr.bf16.mxu0 0
      %438 = vmatmul.mubr.bf16.gmra.mxu0 %v358
      %v439 = vpop.f32.mrf.mxu0
      %v440 = vadd.f32 %v342, %v439
      %v441 = vpop.f32.mrf.mxu0
      %v442 = vpop.f32.mrf.mxu0
      %v443 = vadd.f32 %v342, %v442
      %v444 = vpop.f32.mrf.mxu0
      %445 = vmatprep.mubr.bf16.mxu0 0
      %446 = vmatmul.mubr.bf16.gmra.mxu0 %v361
      %v447 = vpop.f32.mrf.mxu0
      %v448 = vadd.f32 %v342, %v447
      %v449 = vpop.f32.mrf.mxu0
      %v450 = vpop.f32.mrf.mxu0
      %v451 = vadd.f32 %v342, %v450
      %v452 = vpop.f32.mrf.mxu0
      %453 = vmatprep.mubr.bf16.mxu0 0
      %454 = vmatmul.mubr.bf16.gmra.mxu0 %v364
      %v455 = vpop.f32.mrf.mxu0
      %v456 = vadd.f32 %v342, %v455
      %v457 = vpop.f32.mrf.mxu0
      %v458 = vpop.f32.mrf.mxu0
      %v459 = vadd.f32 %v342, %v458
      %v460 = vpop.f32.mrf.mxu0
      %461 = vmatprep.mubr.bf16.mxu0 0
      %462 = vmatmul.mubr.bf16.gmra.mxu0 %v367
      %v463 = vpop.f32.mrf.mxu0
      %v464 = vadd.f32 %v342, %v463
      %v465 = vpop.f32.mrf.mxu0
      %v466 = vpop.f32.mrf.mxu0
      %v467 = vadd.f32 %v342, %v466
      %v468 = vpop.f32.mrf.mxu0
      %469 = vmatprep.mubr.bf16.mxu0 0
      %470 = vmatmul.mubr.bf16.gmra.mxu0 %v370
      %v471 = vpop.f32.mrf.mxu0
      %v472 = vadd.f32 %v342, %v471
      %v473 = vpop.f32.mrf.mxu0
      %v474 = vpop.f32.mrf.mxu0
      %v475 = vadd.f32 %v342, %v474
      %v476 = vpop.f32.mrf.mxu0
      %477 = vmatprep.mubr.bf16.mxu0 0
      %478 = vmatmul.mubr.bf16.gmra.mxu0 %v373
      %v479 = vpop.f32.mrf.mxu0
      %v480 = vadd.f32 %v342, %v479
      %v481 = vpop.f32.mrf.mxu0
      %v482 = vpop.f32.mrf.mxu0
      %v483 = vadd.f32 %v342, %v482
      %v484 = vpop.f32.mrf.mxu0
      %485 = vmatprep.mubr.bf16.mxu0 0
      %486 = vmatmul.mubr.bf16.gmra.mxu0 %v376
      %v487 = vpop.f32.mrf.mxu0
      %v488 = vadd.f32 %v342, %v487
      %v489 = vpop.f32.mrf.mxu0
      %v490 = vpop.f32.mrf.mxu0
      %v491 = vadd.f32 %v342, %v490
      %v492 = vpop.f32.mrf.mxu0
      %493 = vmatprep.mubr.bf16.mxu0 0
      %494 = vmatmul.mubr.bf16.gmra.mxu0 %v379
      %v495 = vpop.f32.mrf.mxu0
      %v496 = vadd.f32 %v342, %v495
      %v497 = vpop.f32.mrf.mxu0
      %v498 = vpop.f32.mrf.mxu0
      %v499 = vadd.f32 %v342, %v498
      %v500 = vpop.f32.mrf.mxu0
      %501 = vmatprep.mubr.bf16.mxu0 0
      %502 = vmatmul.mubr.bf16.gmra.mxu0 %v382
      %v503 = vpop.f32.mrf.mxu0
      %v504 = vadd.f32 %v342, %v503
      %v505 = vpop.f32.mrf.mxu0
      %v506 = vpop.f32.mrf.mxu0
      %v507 = vadd.f32 %v342, %v506
      %v508 = vpop.f32.mrf.mxu0
      %509 = vmatprep.mubr.bf16.mxu0 0
      %510 = vmatmul.mubr.bf16.gmra.mxu0 %v385
      %v511 = vpop.f32.mrf.mxu0
      %v512 = vadd.f32 %v342, %v511
      %v513 = vpop.f32.mrf.mxu0
      %v514 = vpop.f32.mrf.mxu0
      %v515 = vadd.f32 %v342, %v514
      %v516 = vpop.f32.mrf.mxu0
      %517 = vmatprep.mubr.bf16.mxu0 0
      %518 = vmatmul.mubr.bf16.gmra.mxu0 %v388
      %v519 = vpop.f32.mrf.mxu0
      %v520 = vadd.f32 %v342, %v519
      %v521 = vpop.f32.mrf.mxu0
      %v522 = vpop.f32.mrf.mxu0
      %v523 = vadd.f32 %v342, %v522
      %v524 = vpop.f32.mrf.mxu0
      %525 = vmatprep.mubr.bf16.mxu0 0
      %526 = vmatmul.mubr.bf16.gmra.mxu0 %v391
      %v527 = vpop.f32.mrf.mxu0
      %v528 = vadd.f32 %v342, %v527
      %v529 = vpop.f32.mrf.mxu0
      %v530 = vpop.f32.mrf.mxu0
      %v531 = vadd.f32 %v342, %v530
      %v532 = vpop.f32.mrf.mxu0
      %533 = vmatprep.mubr.bf16.mxu0 0
      %534 = vmatmul.mubr.bf16.gmra.mxu0 %v394
      %v535 = vpop.f32.mrf.mxu0
      %v536 = vadd.f32 %v342, %v535
      %v537 = vpop.f32.mrf.mxu0
      %v538 = vpop.f32.mrf.mxu0
      %v539 = vadd.f32 %v342, %v538
      %v540 = vpop.f32.mrf.mxu0
      %541 = vmatprep.mubr.bf16.mxu0 0
      %542 = vmatmul.mubr.bf16.gmra.mxu0 %v397
      %v543 = vpop.f32.mrf.mxu0
      %v544 = vadd.f32 %v342, %v543
      %v545 = vpop.f32.mrf.mxu0
      %v546 = vpop.f32.mrf.mxu0
      %v547 = vadd.f32 %v342, %v546
      %v548 = vpop.f32.mrf.mxu0
      %549 = vmatprep.mubr.bf16.mxu0 0
      %550 = vmatmul.mubr.bf16.gmra.mxu0 %v400
      %v551 = vpop.f32.mrf.mxu0
      %v552 = vadd.f32 %v342, %v551
      %v553 = vpop.f32.mrf.mxu0
      %v554 = vpop.f32.mrf.mxu0
      %v555 = vadd.f32 %v342, %v554
      %v556 = vpop.f32.mrf.mxu0
      %557 = vmatprep.mubr.bf16.mxu0 0
      %558 = vmatmul.mubr.bf16.gmra.mxu0 %v403
      %v559 = vpop.f32.mrf.mxu0
      %v560 = vadd.f32 %v342, %v559
      %v561 = vpop.f32.mrf.mxu0
      %v562 = vpop.f32.mrf.mxu0
      %v563 = vadd.f32 %v342, %v562
      %v564 = vpop.f32.mrf.mxu0
      %565 = vdwg.mxu0
      %v566 = vmax.f32 %v440, 0.0
      %v567 = vmax.f32 %v443, 0.0
      %v568 = vmax.f32 %v448, 0.0
      %v569 = vmax.f32 %v451, 0.0
      %v570 = vmax.f32 %v456, 0.0
      %v571 = vmax.f32 %v459, 0.0
      %v572 = vmax.f32 %v464, 0.0
      %v573 = vmax.f32 %v467, 0.0
      %v574 = vmax.f32 %v472, 0.0
      %v575 = vmax.f32 %v475, 0.0
      %v576 = vmax.f32 %v480, 0.0
      %v577 = vmax.f32 %v483, 0.0
      %v578 = vmax.f32 %v488, 0.0
      %v579 = vmax.f32 %v491, 0.0
      %v580 = vmax.f32 %v496, 0.0
      %v581 = vmax.f32 %v499, 0.0
      %v582 = vmax.f32 %v504, 0.0
      %v583 = vmax.f32 %v507, 0.0
      %v584 = vmax.f32 %v512, 0.0
      %v585 = vmax.f32 %v515, 0.0
      %v586 = vmax.f32 %v520, 0.0
      %v587 = vmax.f32 %v523, 0.0
      %v588 = vmax.f32 %v528, 0.0
      %v589 = vmax.f32 %v531, 0.0
      %v590 = vmax.f32 %v536, 0.0
      %v591 = vmax.f32 %v539, 0.0
      %v592 = vmax.f32 %v544, 0.0
      %v593 = vmax.f32 %v547, 0.0
      %v594 = vmax.f32 %v552, 0.0
      %v595 = vmax.f32 %v555, 0.0
      %v596 = vmax.f32 %v560, 0.0
      %v597 = vmax.f32 %v563, 0.0
      %v598 = vpack.c.bf16 %v567, %v566
      %v599 = vpack.c.bf16 %v569, %v568
      %v600 = vpack.c.bf16 %v571, %v570
      %v601 = vpack.c.bf16 %v573, %v572
      %v602 = vpack.c.bf16 %v575, %v574
      %v603 = vpack.c.bf16 %v577, %v576
      %v604 = vpack.c.bf16 %v579, %v578
      %v605 = vpack.c.bf16 %v581, %v580
      %v606 = vpack.c.bf16 %v583, %v582
      %v607 = vpack.c.bf16 %v585, %v584
      %v608 = vpack.c.bf16 %v587, %v586
      %v609 = vpack.c.bf16 %v589, %v588
      %v610 = vpack.c.bf16 %v591, %v590
      %v611 = vpack.c.bf16 %v593, %v592
      %v612 = vpack.c.bf16 %v595, %v594
      %v613 = vpack.c.bf16 %v597, %v596
      %v614 = vld [vmem:[%s3] sm:$0xff]
      %v615 = vld [vmem:[%s3 + $0x8] sm:$0xff]
      %v616 = vld [vmem:[%s3 + $0x10] sm:$0xff]
      %v617 = vld [vmem:[%s3 + $0x18] sm:$0xff]
      %v618 = vld [vmem:[%s3 + $0x20] sm:$0xff]
      %v619 = vld [vmem:[%s3 + $0x28] sm:$0xff]
      %v620 = vld [vmem:[%s3 + $0x30] sm:$0xff]
      %v621 = vld [vmem:[%s3 + $0x38] sm:$0xff]
      %v622 = vld [vmem:[%s3 + $0x40] sm:$0xff]
      %v623 = vld [vmem:[%s3 + $0x48] sm:$0xff]
      %v624 = vld [vmem:[%s3 + $0x50] sm:$0xff]
      %v625 = vld [vmem:[%s3 + $0x58] sm:$0xff]
      %v626 = vld [vmem:[%s3 + $0x60] sm:$0xff]
      %v627 = vld [vmem:[%s3 + $0x68] sm:$0xff]
      %v628 = vld [vmem:[%s3 + $0x70] sm:$0xff]
      %v629 = vld [vmem:[%s3 + $0x78] sm:$0xff]
      %v630 = vld [vmem:[%s4] sm:$0x3]
      %v632 = vlaneseq
      %v633 = vshrl.u32 %v632, 7
      %v634 = vsub.s32 0, %v633
      %v635 = vrot.slane %v630, %v634
      %v636 = vlaneseq
      %v637 = vshrl.u32 %v636, 7
      %v638 = vsub.s32 1, %v637
      %v639 = vrot.slane %v630, %v638
      %v658 = vunpack.c.l.b16 %v614
      %v659 = vunpack.c.h.b16 %v614
      %v660 = vunpack.c.l.b16 %v615
      %v661 = vunpack.c.h.b16 %v615
      %v662 = vunpack.c.l.b16 %v616
      %v663 = vunpack.c.h.b16 %v616
      %v664 = vunpack.c.l.b16 %v617
      %v665 = vunpack.c.h.b16 %v617
      %v666 = vunpack.c.l.b16 %v618
      %v667 = vunpack.c.h.b16 %v618
      %v668 = vunpack.c.l.b16 %v619
      %v669 = vunpack.c.h.b16 %v619
      %v670 = vunpack.c.l.b16 %v620
      %v671 = vunpack.c.h.b16 %v620
      %v672 = vunpack.c.l.b16 %v621
      %v673 = vunpack.c.h.b16 %v621
      %v674 = vunpack.c.l.b16 %v622
      %v675 = vunpack.c.h.b16 %v622
      %v676 = vunpack.c.l.b16 %v623
      %v677 = vunpack.c.h.b16 %v623
      %v678 = vunpack.c.l.b16 %v624
      %v679 = vunpack.c.h.b16 %v624
      %v680 = vunpack.c.l.b16 %v625
      %v681 = vunpack.c.h.b16 %v625
      %v682 = vunpack.c.l.b16 %v626
      %v683 = vunpack.c.h.b16 %v626
      %v684 = vunpack.c.l.b16 %v627
      %v685 = vunpack.c.h.b16 %v627
      %v686 = vunpack.c.l.b16 %v628
      %v687 = vunpack.c.h.b16 %v628
      %v688 = vunpack.c.l.b16 %v629
      %v689 = vunpack.c.h.b16 %v629
      %v690 = vpack.c.b16 %v660, %v658
      %v691 = vpack.c.b16 %v661, %v659
      %v692 = vpack.c.b16 %v664, %v662
      %v693 = vpack.c.b16 %v665, %v663
      %v694 = vpack.c.b16 %v668, %v666
      %v695 = vpack.c.b16 %v669, %v667
      %v696 = vpack.c.b16 %v672, %v670
      %v697 = vpack.c.b16 %v673, %v671
      %v698 = vpack.c.b16 %v676, %v674
      %v699 = vpack.c.b16 %v677, %v675
      %v700 = vpack.c.b16 %v680, %v678
      %v701 = vpack.c.b16 %v681, %v679
      %v702 = vpack.c.b16 %v684, %v682
      %v703 = vpack.c.b16 %v685, %v683
      %v704 = vpack.c.b16 %v688, %v686
      %v705 = vpack.c.b16 %v689, %v687
      %722 = vmatprep.subr.bf16.mxu0 %v705
      %723 = vmatpush1.bf16.msra.mxu0 %v704
      %724 = vmatprep.subr.bf16.mxu0 %v703
      %725 = vmatpush1.bf16.msra.mxu0 %v702
      %726 = vmatprep.subr.bf16.mxu0 %v701
      %727 = vmatpush1.bf16.msra.mxu0 %v700
      %728 = vmatprep.subr.bf16.mxu0 %v699
      %729 = vmatpush1.bf16.msra.mxu0 %v698
      %730 = vmatprep.subr.bf16.mxu0 %v697
      %731 = vmatpush1.bf16.msra.mxu0 %v696
      %732 = vmatprep.subr.bf16.mxu0 %v695
      %733 = vmatpush1.bf16.msra.mxu0 %v694
      %734 = vmatprep.subr.bf16.mxu0 %v693
      %735 = vmatpush1.bf16.msra.mxu0 %v692
      %736 = vmatprep.subr.bf16.mxu0 %v691
      %737 = vmatpush1.bf16.msra.mxu0 %v690
      %738 = vmatprep.subr.bf16.mxu0 0
      %739 = vmatpush2.bf16.msra.mxu0 0
      %740 = vmatprep.subr.bf16.mxu0 0
      %741 = vmatpush2.bf16.msra.mxu0 0
      %742 = vmatprep.subr.bf16.mxu0 0
      %743 = vmatpush2.bf16.msra.mxu0 0
      %744 = vmatprep.subr.bf16.mxu0 0
      %745 = vmatpush2.bf16.msra.mxu0 0
      %746 = vmatprep.subr.bf16.mxu0 0
      %747 = vmatpush2.bf16.msra.mxu0 0
      %748 = vmatprep.subr.bf16.mxu0 0
      %749 = vmatpush2.bf16.msra.mxu0 0
      %750 = vmatprep.subr.bf16.mxu0 0
      %751 = vmatpush2.bf16.msra.mxu0 0
      %752 = vmatprep.subr.bf16.mxu0 0
      %753 = vmatpush2.bf16.msra.mxu0 0
      %754 = vmatprep.mubr.bf16.mxu0 0
      %755 = vmatmul.mubr.bf16.gmra.mxu0 %v598
      %v756 = vpop.f32.mrf.mxu0
      %v757 = vadd.f32 %v635, %v756
      %v758 = vpop.f32.mrf.mxu0
      %v759 = vadd.f32 %v639, %v758
      %v760 = vpop.f32.mrf.mxu0
      %v761 = vadd.f32 %v635, %v760
      %v762 = vpop.f32.mrf.mxu0
      %v763 = vadd.f32 %v639, %v762
      %764 = vmatprep.mubr.bf16.mxu0 0
      %765 = vmatmul.mubr.bf16.gmra.mxu0 %v599
      %v766 = vpop.f32.mrf.mxu0
      %v767 = vadd.f32 %v635, %v766
      %v768 = vpop.f32.mrf.mxu0
      %v769 = vadd.f32 %v639, %v768
      %v770 = vpop.f32.mrf.mxu0
      %v771 = vadd.f32 %v635, %v770
      %v772 = vpop.f32.mrf.mxu0
      %v773 = vadd.f32 %v639, %v772
      %774 = vmatprep.mubr.bf16.mxu0 0
      %775 = vmatmul.mubr.bf16.gmra.mxu0 %v600
      %v776 = vpop.f32.mrf.mxu0
      %v777 = vadd.f32 %v635, %v776
      %v778 = vpop.f32.mrf.mxu0
      %v779 = vadd.f32 %v639, %v778
      %v780 = vpop.f32.mrf.mxu0
      %v781 = vadd.f32 %v635, %v780
      %v782 = vpop.f32.mrf.mxu0
      %v783 = vadd.f32 %v639, %v782
      %784 = vmatprep.mubr.bf16.mxu0 0
      %785 = vmatmul.mubr.bf16.gmra.mxu0 %v601
      %v786 = vpop.f32.mrf.mxu0
      %v787 = vadd.f32 %v635, %v786
      %v788 = vpop.f32.mrf.mxu0
      %v789 = vadd.f32 %v639, %v788
      %v790 = vpop.f32.mrf.mxu0
      %v791 = vadd.f32 %v635, %v790
      %v792 = vpop.f32.mrf.mxu0
      %v793 = vadd.f32 %v639, %v792
      %794 = vmatprep.mubr.bf16.mxu0 0
      %795 = vmatmul.mubr.bf16.gmra.mxu0 %v602
      %v796 = vpop.f32.mrf.mxu0
      %v797 = vadd.f32 %v635, %v796
      %v798 = vpop.f32.mrf.mxu0
      %v799 = vadd.f32 %v639, %v798
      %v800 = vpop.f32.mrf.mxu0
      %v801 = vadd.f32 %v635, %v800
      %v802 = vpop.f32.mrf.mxu0
      %v803 = vadd.f32 %v639, %v802
      %804 = vmatprep.mubr.bf16.mxu0 0
      %805 = vmatmul.mubr.bf16.gmra.mxu0 %v603
      %v806 = vpop.f32.mrf.mxu0
      %v807 = vadd.f32 %v635, %v806
      %v808 = vpop.f32.mrf.mxu0
      %v809 = vadd.f32 %v639, %v808
      %v810 = vpop.f32.mrf.mxu0
      %v811 = vadd.f32 %v635, %v810
      %v812 = vpop.f32.mrf.mxu0
      %v813 = vadd.f32 %v639, %v812
      %814 = vmatprep.mubr.bf16.mxu0 0
      %815 = vmatmul.mubr.bf16.gmra.mxu0 %v604
      %v816 = vpop.f32.mrf.mxu0
      %v817 = vadd.f32 %v635, %v816
      %v818 = vpop.f32.mrf.mxu0
      %v819 = vadd.f32 %v639, %v818
      %v820 = vpop.f32.mrf.mxu0
      %v821 = vadd.f32 %v635, %v820
      %v822 = vpop.f32.mrf.mxu0
      %v823 = vadd.f32 %v639, %v822
      %824 = vmatprep.mubr.bf16.mxu0 0
      %825 = vmatmul.mubr.bf16.gmra.mxu0 %v605
      %v826 = vpop.f32.mrf.mxu0
      %v827 = vadd.f32 %v635, %v826
      %v828 = vpop.f32.mrf.mxu0
      %v829 = vadd.f32 %v639, %v828
      %v830 = vpop.f32.mrf.mxu0
      %v831 = vadd.f32 %v635, %v830
      %v832 = vpop.f32.mrf.mxu0
      %v833 = vadd.f32 %v639, %v832
      %834 = vmatprep.mubr.bf16.mxu0 0
      %835 = vmatmul.mubr.bf16.gmra.mxu0 %v606
      %v836 = vpop.f32.mrf.mxu0
      %v837 = vadd.f32 %v635, %v836
      %v838 = vpop.f32.mrf.mxu0
      %v839 = vadd.f32 %v639, %v838
      %v840 = vpop.f32.mrf.mxu0
      %v841 = vadd.f32 %v635, %v840
      %v842 = vpop.f32.mrf.mxu0
      %v843 = vadd.f32 %v639, %v842
      %844 = vmatprep.mubr.bf16.mxu0 0
      %845 = vmatmul.mubr.bf16.gmra.mxu0 %v607
      %v846 = vpop.f32.mrf.mxu0
      %v847 = vadd.f32 %v635, %v846
      %v848 = vpop.f32.mrf.mxu0
      %v849 = vadd.f32 %v639, %v848
      %v850 = vpop.f32.mrf.mxu0
      %v851 = vadd.f32 %v635, %v850
      %v852 = vpop.f32.mrf.mxu0
      %v853 = vadd.f32 %v639, %v852
      %854 = vmatprep.mubr.bf16.mxu0 0
      %855 = vmatmul.mubr.bf16.gmra.mxu0 %v608
      %v856 = vpop.f32.mrf.mxu0
      %v857 = vadd.f32 %v635, %v856
      %v858 = vpop.f32.mrf.mxu0
      %v859 = vadd.f32 %v639, %v858
      %v860 = vpop.f32.mrf.mxu0
      %v861 = vadd.f32 %v635, %v860
      %v862 = vpop.f32.mrf.mxu0
      %v863 = vadd.f32 %v639, %v862
      %864 = vmatprep.mubr.bf16.mxu0 0
      %865 = vmatmul.mubr.bf16.gmra.mxu0 %v609
      %v866 = vpop.f32.mrf.mxu0
      %v867 = vadd.f32 %v635, %v866
      %v868 = vpop.f32.mrf.mxu0
      %v869 = vadd.f32 %v639, %v868
      %v870 = vpop.f32.mrf.mxu0
      %v871 = vadd.f32 %v635, %v870
      %v872 = vpop.f32.mrf.mxu0
      %v873 = vadd.f32 %v639, %v872
      %874 = vmatprep.mubr.bf16.mxu0 0
      %875 = vmatmul.mubr.bf16.gmra.mxu0 %v610
      %v876 = vpop.f32.mrf.mxu0
      %v877 = vadd.f32 %v635, %v876
      %v878 = vpop.f32.mrf.mxu0
      %v879 = vadd.f32 %v639, %v878
      %v880 = vpop.f32.mrf.mxu0
      %v881 = vadd.f32 %v635, %v880
      %v882 = vpop.f32.mrf.mxu0
      %v883 = vadd.f32 %v639, %v882
      %884 = vmatprep.mubr.bf16.mxu0 0
      %885 = vmatmul.mubr.bf16.gmra.mxu0 %v611
      %v886 = vpop.f32.mrf.mxu0
      %v887 = vadd.f32 %v635, %v886
      %v888 = vpop.f32.mrf.mxu0
      %v889 = vadd.f32 %v639, %v888
      %v890 = vpop.f32.mrf.mxu0
      %v891 = vadd.f32 %v635, %v890
      %v892 = vpop.f32.mrf.mxu0
      %v893 = vadd.f32 %v639, %v892
      %894 = vmatprep.mubr.bf16.mxu0 0
      %895 = vmatmul.mubr.bf16.gmra.mxu0 %v612
      %v896 = vpop.f32.mrf.mxu0
      %v897 = vadd.f32 %v635, %v896
      %v898 = vpop.f32.mrf.mxu0
      %v899 = vadd.f32 %v639, %v898
      %v900 = vpop.f32.mrf.mxu0
      %v901 = vadd.f32 %v635, %v900
      %v902 = vpop.f32.mrf.mxu0
      %v903 = vadd.f32 %v639, %v902
      %904 = vmatprep.mubr.bf16.mxu0 0
      %905 = vmatmul.mubr.bf16.gmra.mxu0 %v613
      %v906 = vpop.f32.mrf.mxu0
      %v907 = vadd.f32 %v635, %v906
      %v908 = vpop.f32.mrf.mxu0
      %v909 = vadd.f32 %v639, %v908
      %v910 = vpop.f32.mrf.mxu0
      %v911 = vadd.f32 %v635, %v910
      %v912 = vpop.f32.mrf.mxu0
      %v913 = vadd.f32 %v639, %v912
      %914 = vdwg.mxu0
      %v915 = vmax.f32 %v757, 0.0
      %v916 = vmax.f32 %v759, 0.0
      %v917 = vmax.f32 %v761, 0.0
      %v918 = vmax.f32 %v763, 0.0
      %v919 = vmax.f32 %v767, 0.0
      %v920 = vmax.f32 %v769, 0.0
      %v921 = vmax.f32 %v771, 0.0
      %v922 = vmax.f32 %v773, 0.0
      %v923 = vmax.f32 %v777, 0.0
      %v924 = vmax.f32 %v779, 0.0
      %v925 = vmax.f32 %v781, 0.0
      %v926 = vmax.f32 %v783, 0.0
      %v927 = vmax.f32 %v787, 0.0
      %v928 = vmax.f32 %v789, 0.0
      %v929 = vmax.f32 %v791, 0.0
      %v930 = vmax.f32 %v793, 0.0
      %v931 = vmax.f32 %v797, 0.0
      %v932 = vmax.f32 %v799, 0.0
      %v933 = vmax.f32 %v801, 0.0
      %v934 = vmax.f32 %v803, 0.0
      %v935 = vmax.f32 %v807, 0.0
      %v936 = vmax.f32 %v809, 0.0
      %v937 = vmax.f32 %v811, 0.0
      %v938 = vmax.f32 %v813, 0.0
      %v939 = vmax.f32 %v817, 0.0
      %v940 = vmax.f32 %v819, 0.0
      %v941 = vmax.f32 %v821, 0.0
      %v942 = vmax.f32 %v823, 0.0
      %v943 = vmax.f32 %v827, 0.0
      %v944 = vmax.f32 %v829, 0.0
      %v945 = vmax.f32 %v831, 0.0
      %v946 = vmax.f32 %v833, 0.0
      %v947 = vmax.f32 %v837, 0.0
      %v948 = vmax.f32 %v839, 0.0
      %v949 = vmax.f32 %v841, 0.0
      %v950 = vmax.f32 %v843, 0.0
      %v951 = vmax.f32 %v847, 0.0
      %v952 = vmax.f32 %v849, 0.0
      %v953 = vmax.f32 %v851, 0.0
      %v954 = vmax.f32 %v853, 0.0
      %v955 = vmax.f32 %v857, 0.0
      %v956 = vmax.f32 %v859, 0.0
      %v957 = vmax.f32 %v861, 0.0
      %v958 = vmax.f32 %v863, 0.0
      %v959 = vmax.f32 %v867, 0.0
      %v960 = vmax.f32 %v869, 0.0
      %v961 = vmax.f32 %v871, 0.0
      %v962 = vmax.f32 %v873, 0.0
      %v963 = vmax.f32 %v877, 0.0
      %v964 = vmax.f32 %v879, 0.0
      %v965 = vmax.f32 %v881, 0.0
      %v966 = vmax.f32 %v883, 0.0
      %v967 = vmax.f32 %v887, 0.0
      %v968 = vmax.f32 %v889, 0.0
      %v969 = vmax.f32 %v891, 0.0
      %v970 = vmax.f32 %v893, 0.0
      %v971 = vmax.f32 %v897, 0.0
      %v972 = vmax.f32 %v899, 0.0
      %v973 = vmax.f32 %v901, 0.0
      %v974 = vmax.f32 %v903, 0.0
      %v975 = vmax.f32 %v907, 0.0
      %v976 = vmax.f32 %v909, 0.0
      %v977 = vmax.f32 %v911, 0.0
      %v978 = vmax.f32 %v913, 0.0
      %v979 = vpack.c.bf16 %v917, %v915
      %v980 = vpack.c.bf16 %v918, %v916
      %v981 = vpack.c.bf16 %v921, %v919
      %v982 = vpack.c.bf16 %v922, %v920
      %v983 = vpack.c.bf16 %v925, %v923
      %v984 = vpack.c.bf16 %v926, %v924
      %v985 = vpack.c.bf16 %v929, %v927
      %v986 = vpack.c.bf16 %v930, %v928
      %v987 = vpack.c.bf16 %v933, %v931
      %v988 = vpack.c.bf16 %v934, %v932
      %v989 = vpack.c.bf16 %v937, %v935
      %v990 = vpack.c.bf16 %v938, %v936
      %v991 = vpack.c.bf16 %v941, %v939
      %v992 = vpack.c.bf16 %v942, %v940
      %v993 = vpack.c.bf16 %v945, %v943
      %v994 = vpack.c.bf16 %v946, %v944
      %v995 = vpack.c.bf16 %v949, %v947
      %v996 = vpack.c.bf16 %v950, %v948
      %v997 = vpack.c.bf16 %v953, %v951
      %v998 = vpack.c.bf16 %v954, %v952
      %v999 = vpack.c.bf16 %v957, %v955
      %v1000 = vpack.c.bf16 %v958, %v956
      %v1001 = vpack.c.bf16 %v961, %v959
      %v1002 = vpack.c.bf16 %v962, %v960
      %v1003 = vpack.c.bf16 %v965, %v963
      %v1004 = vpack.c.bf16 %v966, %v964
      %v1005 = vpack.c.bf16 %v969, %v967
      %v1006 = vpack.c.bf16 %v970, %v968
      %v1007 = vpack.c.bf16 %v973, %v971
      %v1008 = vpack.c.bf16 %v974, %v972
      %v1009 = vpack.c.bf16 %v977, %v975
      %v1010 = vpack.c.bf16 %v978, %v976
      %v1011 = vld [vmem:[%s5] sm:$0xff]
      %v1012 = vld [vmem:[%s5 + $0x8] sm:$0xff]
      %v1013 = vld [vmem:[%s5 + $0x10] sm:$0xff]
      %v1014 = vld [vmem:[%s5 + $0x18] sm:$0xf]
      %v1015 = vld [vmem:[%s5 + $0x1c] sm:$0xff]
      %v1016 = vld [vmem:[%s5 + $0x24] sm:$0xff]
      %v1017 = vld [vmem:[%s5 + $0x2c] sm:$0xff]
      %v1018 = vld [vmem:[%s5 + $0x34] sm:$0xf]
      %v1019 = vld [vmem:[%s5 + $0x38] sm:$0xff]
      %v1020 = vld [vmem:[%s5 + $0x40] sm:$0xff]
      %v1021 = vld [vmem:[%s5 + $0x48] sm:$0xff]
      %v1022 = vld [vmem:[%s5 + $0x50] sm:$0xf]
      %v1023 = vld [vmem:[%s5 + $0x54] sm:$0xff]
      %v1024 = vld [vmem:[%s5 + $0x5c] sm:$0xff]
      %v1025 = vld [vmem:[%s5 + $0x64] sm:$0xff]
      %v1026 = vld [vmem:[%s5 + $0x6c] sm:$0xf]
      %v1027 = vld [vmem:[%s5 + $0x70] sm:$0xff]
      %v1028 = vld [vmem:[%s5 + $0x78] sm:$0xff]
      %v1029 = vld [vmem:[%s5 + $0x80] sm:$0xff]
      %v1030 = vld [vmem:[%s5 + $0x88] sm:$0xf]
      %v1031 = vld [vmem:[%s5 + $0x8c] sm:$0xff]
      %v1032 = vld [vmem:[%s5 + $0x94] sm:$0xff]
      %v1033 = vld [vmem:[%s5 + $0x9c] sm:$0xff]
      %v1034 = vld [vmem:[%s5 + $0xa4] sm:$0xf]
      %v1035 = vld [vmem:[%s5 + $0xa8] sm:$0xff]
      %v1036 = vld [vmem:[%s5 + $0xb0] sm:$0xff]
      %v1037 = vld [vmem:[%s5 + $0xb8] sm:$0xff]
      %v1038 = vld [vmem:[%s5 + $0xc0] sm:$0xf]
      %v1039 = vld [vmem:[%s5 + $0xc4] sm:$0xff]
      %v1040 = vld [vmem:[%s5 + $0xcc] sm:$0xff]
      %v1041 = vld [vmem:[%s5 + $0xd4] sm:$0xff]
      %v1042 = vld [vmem:[%s5 + $0xdc] sm:$0xf]
      %v1043 = vld [vmem:[%s5 + $0xe0] sm:$0xff]
      %v1044 = vld [vmem:[%s5 + $0xe8] sm:$0xff]
      %v1045 = vld [vmem:[%s5 + $0xf0] sm:$0xff]
      %v1046 = vld [vmem:[%s5 + $0xf8] sm:$0xf]
      %v1047 = vld [vmem:[%s5 + $0xfc] sm:$0xff]
      %v1048 = vld [vmem:[%s5 + $0x104] sm:$0xff]
      %v1049 = vld [vmem:[%s5 + $0x10c] sm:$0xff]
      %v1050 = vld [vmem:[%s5 + $0x114] sm:$0xf]
      %v1051 = vld [vmem:[%s5 + $0x118] sm:$0xff]
      %v1052 = vld [vmem:[%s5 + $0x120] sm:$0xff]
      %v1053 = vld [vmem:[%s5 + $0x128] sm:$0xff]
      %v1054 = vld [vmem:[%s5 + $0x130] sm:$0xf]
      %v1055 = vld [vmem:[%s5 + $0x134] sm:$0xff]
      %v1056 = vld [vmem:[%s5 + $0x13c] sm:$0xff]
      %v1057 = vld [vmem:[%s5 + $0x144] sm:$0xff]
      %v1058 = vld [vmem:[%s5 + $0x14c] sm:$0xf]
      %v1059 = vld [vmem:[%s5 + $0x150] sm:$0xff]
      %v1060 = vld [vmem:[%s5 + $0x158] sm:$0xff]
      %v1061 = vld [vmem:[%s5 + $0x160] sm:$0xff]
      %v1062 = vld [vmem:[%s5 + $0x168] sm:$0xf]
      %v1063 = vld [vmem:[%s5 + $0x16c] sm:$0xff]
      %v1064 = vld [vmem:[%s5 + $0x174] sm:$0xff]
      %v1065 = vld [vmem:[%s5 + $0x17c] sm:$0xff]
      %v1066 = vld [vmem:[%s5 + $0x184] sm:$0xf]
      %v1067 = vld [vmem:[%s5 + $0x188] sm:$0xff]
      %v1068 = vld [vmem:[%s5 + $0x190] sm:$0xff]
      %v1069 = vld [vmem:[%s5 + $0x198] sm:$0xff]
      %v1070 = vld [vmem:[%s5 + $0x1a0] sm:$0xf]
      %v1071 = vld [vmem:[%s5 + $0x1a4] sm:$0xff]
      %v1072 = vld [vmem:[%s5 + $0x1ac] sm:$0xff]
      %v1073 = vld [vmem:[%s5 + $0x1b4] sm:$0xff]
      %v1074 = vld [vmem:[%s5 + $0x1bc] sm:$0xf]
      %v1075 = vld [vmem:[%s5 + $0x1c0] sm:$0xff]
      %v1076 = vld [vmem:[%s5 + $0x1c8] sm:$0xff]
      %v1077 = vld [vmem:[%s5 + $0x1d0] sm:$0xff]
      %v1078 = vld [vmem:[%s5 + $0x1d8] sm:$0xf]
      %v1079 = vld [vmem:[%s5 + $0x1dc] sm:$0xff]
      %v1080 = vld [vmem:[%s5 + $0x1e4] sm:$0xff]
      %v1081 = vld [vmem:[%s5 + $0x1ec] sm:$0xff]
      %v1082 = vld [vmem:[%s5 + $0x1f4] sm:$0xf]
      %v1083 = vld [vmem:[%s5 + $0x1f8] sm:$0xff]
      %v1084 = vld [vmem:[%s5 + $0x200] sm:$0xff]
      %v1085 = vld [vmem:[%s5 + $0x208] sm:$0xff]
      %v1086 = vld [vmem:[%s5 + $0x210] sm:$0xf]
      %v1087 = vld [vmem:[%s5 + $0x214] sm:$0xff]
      %v1088 = vld [vmem:[%s5 + $0x21c] sm:$0xff]
      %v1089 = vld [vmem:[%s5 + $0x224] sm:$0xff]
      %v1090 = vld [vmem:[%s5 + $0x22c] sm:$0xf]
      %v1091 = vld [vmem:[%s5 + $0x230] sm:$0xff]
      %v1092 = vld [vmem:[%s5 + $0x238] sm:$0xff]
      %v1093 = vld [vmem:[%s5 + $0x240] sm:$0xff]
      %v1094 = vld [vmem:[%s5 + $0x248] sm:$0xf]
      %v1095 = vld [vmem:[%s5 + $0x24c] sm:$0xff]
      %v1096 = vld [vmem:[%s5 + $0x254] sm:$0xff]
      %v1097 = vld [vmem:[%s5 + $0x25c] sm:$0xff]
      %v1098 = vld [vmem:[%s5 + $0x264] sm:$0xf]
      %v1099 = vld [vmem:[%s5 + $0x268] sm:$0xff]
      %v1100 = vld [vmem:[%s5 + $0x270] sm:$0xff]
      %v1101 = vld [vmem:[%s5 + $0x278] sm:$0xff]
      %v1102 = vld [vmem:[%s5 + $0x280] sm:$0xf]
      %v1103 = vld [vmem:[%s5 + $0x284] sm:$0xff]
      %v1104 = vld [vmem:[%s5 + $0x28c] sm:$0xff]
      %v1105 = vld [vmem:[%s5 + $0x294] sm:$0xff]
      %v1106 = vld [vmem:[%s5 + $0x29c] sm:$0xf]
      %v1107 = vld [vmem:[%s5 + $0x2a0] sm:$0xff]
      %v1108 = vld [vmem:[%s5 + $0x2a8] sm:$0xff]
      %v1109 = vld [vmem:[%s5 + $0x2b0] sm:$0xff]
      %v1110 = vld [vmem:[%s5 + $0x2b8] sm:$0xf]
      %v1111 = vld [vmem:[%s5 + $0x2bc] sm:$0xff]
      %v1112 = vld [vmem:[%s5 + $0x2c4] sm:$0xff]
      %v1113 = vld [vmem:[%s5 + $0x2cc] sm:$0xff]
      %v1114 = vld [vmem:[%s5 + $0x2d4] sm:$0xf]
      %v1115 = vld [vmem:[%s5 + $0x2d8] sm:$0xff]
      %v1116 = vld [vmem:[%s5 + $0x2e0] sm:$0xff]
      %v1117 = vld [vmem:[%s5 + $0x2e8] sm:$0xff]
      %v1118 = vld [vmem:[%s5 + $0x2f0] sm:$0xf]
      %v1119 = vld [vmem:[%s5 + $0x2f4] sm:$0xff]
      %v1120 = vld [vmem:[%s5 + $0x2fc] sm:$0xff]
      %v1121 = vld [vmem:[%s5 + $0x304] sm:$0xff]
      %v1122 = vld [vmem:[%s5 + $0x30c] sm:$0xf]
      %v1123 = vld [vmem:[%s5 + $0x310] sm:$0xff]
      %v1124 = vld [vmem:[%s5 + $0x318] sm:$0xff]
      %v1125 = vld [vmem:[%s5 + $0x320] sm:$0xff]
      %v1126 = vld [vmem:[%s5 + $0x328] sm:$0xf]
      %v1127 = vld [vmem:[%s5 + $0x32c] sm:$0xff]
      %v1128 = vld [vmem:[%s5 + $0x334] sm:$0xff]
      %v1129 = vld [vmem:[%s5 + $0x33c] sm:$0xff]
      %v1130 = vld [vmem:[%s5 + $0x344] sm:$0xf]
      %v1131 = vld [vmem:[%s5 + $0x348] sm:$0xff]
      %v1132 = vld [vmem:[%s5 + $0x350] sm:$0xff]
      %v1133 = vld [vmem:[%s5 + $0x358] sm:$0xff]
      %v1134 = vld [vmem:[%s5 + $0x360] sm:$0xf]
      %v1135 = vld [vmem:[%s5 + $0x364] sm:$0xff]
      %v1136 = vld [vmem:[%s5 + $0x36c] sm:$0xff]
      %v1137 = vld [vmem:[%s5 + $0x374] sm:$0xff]
      %v1138 = vld [vmem:[%s5 + $0x37c] sm:$0xf]
      %v1139 = vld [vmem:[%s6] sm:$0xff]
      %v1141 = vlaneseq
      %v1142 = vshrl.u32 %v1141, 7
      %v1143 = vsub.s32 0, %v1142
      %v1144 = vrot.slane %v1139, %v1143
      %v1145 = vlaneseq
      %v1146 = vshrl.u32 %v1145, 7
      %v1147 = vsub.s32 1, %v1146
      %v1148 = vrot.slane %v1139, %v1147
      %v1149 = vlaneseq
      %v1150 = vshrl.u32 %v1149, 7
      %v1151 = vsub.s32 2, %v1150
      %v1152 = vrot.slane %v1139, %v1151
      %v1153 = vlaneseq
      %v1154 = vshrl.u32 %v1153, 7
      %v1155 = vsub.s32 3, %v1154
      %v1156 = vrot.slane %v1139, %v1155
      %v1157 = vlaneseq
      %v1158 = vshrl.u32 %v1157, 7
      %v1159 = vsub.s32 4, %v1158
      %v1160 = vrot.slane %v1139, %v1159
      %v1161 = vlaneseq
      %v1162 = vshrl.u32 %v1161, 7
      %v1163 = vsub.s32 5, %v1162
      %v1164 = vrot.slane %v1139, %v1163
      %v1165 = vlaneseq
      %v1166 = vshrl.u32 %v1165, 7
      %v1167 = vsub.s32 6, %v1166
      %v1168 = vrot.slane %v1139, %v1167
      %v1304 = vunpack.c.l.b16 %v1011
      %v1305 = vunpack.c.h.b16 %v1011
      %v1306 = vunpack.c.l.b16 %v1012
      %v1307 = vunpack.c.h.b16 %v1012
      %v1308 = vunpack.c.l.b16 %v1013
      %v1309 = vunpack.c.h.b16 %v1013
      %v1310 = vunpack.c.l.b16 %v1014
      %v1311 = vunpack.c.l.b16 %v1015
      %v1312 = vunpack.c.h.b16 %v1015
      %v1313 = vunpack.c.l.b16 %v1016
      %v1314 = vunpack.c.h.b16 %v1016
      %v1315 = vunpack.c.l.b16 %v1017
      %v1316 = vunpack.c.h.b16 %v1017
      %v1317 = vunpack.c.l.b16 %v1018
      %v1318 = vunpack.c.l.b16 %v1019
      %v1319 = vunpack.c.h.b16 %v1019
      %v1320 = vunpack.c.l.b16 %v1020
      %v1321 = vunpack.c.h.b16 %v1020
      %v1322 = vunpack.c.l.b16 %v1021
      %v1323 = vunpack.c.h.b16 %v1021
      %v1324 = vunpack.c.l.b16 %v1022
      %v1325 = vunpack.c.l.b16 %v1023
      %v1326 = vunpack.c.h.b16 %v1023
      %v1327 = vunpack.c.l.b16 %v1024
      %v1328 = vunpack.c.h.b16 %v1024
      %v1329 = vunpack.c.l.b16 %v1025
      %v1330 = vunpack.c.h.b16 %v1025
      %v1331 = vunpack.c.l.b16 %v1026
      %v1332 = vunpack.c.l.b16 %v1027
      %v1333 = vunpack.c.h.b16 %v1027
      %v1334 = vunpack.c.l.b16 %v1028
      %v1335 = vunpack.c.h.b16 %v1028
      %v1336 = vunpack.c.l.b16 %v1029
      %v1337 = vunpack.c.h.b16 %v1029
      %v1338 = vunpack.c.l.b16 %v1030
      %v1339 = vunpack.c.l.b16 %v1031
      %v1340 = vunpack.c.h.b16 %v1031
      %v1341 = vunpack.c.l.b16 %v1032
      %v1342 = vunpack.c.h.b16 %v1032
      %v1343 = vunpack.c.l.b16 %v1033
      %v1344 = vunpack.c.h.b16 %v1033
      %v1345 = vunpack.c.l.b16 %v1034
      %v1346 = vunpack.c.l.b16 %v1035
      %v1347 = vunpack.c.h.b16 %v1035
      %v1348 = vunpack.c.l.b16 %v1036
      %v1349 = vunpack.c.h.b16 %v1036
      %v1350 = vunpack.c.l.b16 %v1037
      %v1351 = vunpack.c.h.b16 %v1037
      %v1352 = vunpack.c.l.b16 %v1038
      %v1353 = vunpack.c.l.b16 %v1039
      %v1354 = vunpack.c.h.b16 %v1039
      %v1355 = vunpack.c.l.b16 %v1040
      %v1356 = vunpack.c.h.b16 %v1040
      %v1357 = vunpack.c.l.b16 %v1041
      %v1358 = vunpack.c.h.b16 %v1041
      %v1359 = vunpack.c.l.b16 %v1042
      %v1360 = vunpack.c.l.b16 %v1043
      %v1361 = vunpack.c.h.b16 %v1043
      %v1362 = vunpack.c.l.b16 %v1044
      %v1363 = vunpack.c.h.b16 %v1044
      %v1364 = vunpack.c.l.b16 %v1045
      %v1365 = vunpack.c.h.b16 %v1045
      %v1366 = vunpack.c.l.b16 %v1046
      %v1367 = vunpack.c.l.b16 %v1047
      %v1368 = vunpack.c.h.b16 %v1047
      %v1369 = vunpack.c.l.b16 %v1048
      %v1370 = vunpack.c.h.b16 %v1048
      %v1371 = vunpack.c.l.b16 %v1049
      %v1372 = vunpack.c.h.b16 %v1049
      %v1373 = vunpack.c.l.b16 %v1050
      %v1374 = vunpack.c.l.b16 %v1051
      %v1375 = vunpack.c.h.b16 %v1051
      %v1376 = vunpack.c.l.b16 %v1052
      %v1377 = vunpack.c.h.b16 %v1052
      %v1378 = vunpack.c.l.b16 %v1053
      %v1379 = vunpack.c.h.b16 %v1053
      %v1380 = vunpack.c.l.b16 %v1054
      %v1381 = vunpack.c.l.b16 %v1055
      %v1382 = vunpack.c.h.b16 %v1055
      %v1383 = vunpack.c.l.b16 %v1056
      %v1384 = vunpack.c.h.b16 %v1056
      %v1385 = vunpack.c.l.b16 %v1057
      %v1386 = vunpack.c.h.b16 %v1057
      %v1387 = vunpack.c.l.b16 %v1058
      %v1388 = vunpack.c.l.b16 %v1059
      %v1389 = vunpack.c.h.b16 %v1059
      %v1390 = vunpack.c.l.b16 %v1060
      %v1391 = vunpack.c.h.b16 %v1060
      %v1392 = vunpack.c.l.b16 %v1061
      %v1393 = vunpack.c.h.b16 %v1061
      %v1394 = vunpack.c.l.b16 %v1062
      %v1395 = vunpack.c.l.b16 %v1063
      %v1396 = vunpack.c.h.b16 %v1063
      %v1397 = vunpack.c.l.b16 %v1064
      %v1398 = vunpack.c.h.b16 %v1064
      %v1399 = vunpack.c.l.b16 %v1065
      %v1400 = vunpack.c.h.b16 %v1065
      %v1401 = vunpack.c.l.b16 %v1066
      %v1402 = vunpack.c.l.b16 %v1067
      %v1403 = vunpack.c.h.b16 %v1067
      %v1404 = vunpack.c.l.b16 %v1068
      %v1405 = vunpack.c.h.b16 %v1068
      %v1406 = vunpack.c.l.b16 %v1069
      %v1407 = vunpack.c.h.b16 %v1069
      %v1408 = vunpack.c.l.b16 %v1070
      %v1409 = vunpack.c.l.b16 %v1071
      %v1410 = vunpack.c.h.b16 %v1071
      %v1411 = vunpack.c.l.b16 %v1072
      %v1412 = vunpack.c.h.b16 %v1072
      %v1413 = vunpack.c.l.b16 %v1073
      %v1414 = vunpack.c.h.b16 %v1073
      %v1415 = vunpack.c.l.b16 %v1074
      %v1416 = vunpack.c.l.b16 %v1075
      %v1417 = vunpack.c.h.b16 %v1075
      %v1418 = vunpack.c.l.b16 %v1076
      %v1419 = vunpack.c.h.b16 %v1076
      %v1420 = vunpack.c.l.b16 %v1077
      %v1421 = vunpack.c.h.b16 %v1077
      %v1422 = vunpack.c.l.b16 %v1078
      %v1423 = vunpack.c.l.b16 %v1079
      %v1424 = vunpack.c.h.b16 %v1079
      %v1425 = vunpack.c.l.b16 %v1080
      %v1426 = vunpack.c.h.b16 %v1080
      %v1427 = vunpack.c.l.b16 %v1081
      %v1428 = vunpack.c.h.b16 %v1081
      %v1429 = vunpack.c.l.b16 %v1082
      %v1430 = vunpack.c.l.b16 %v1083
      %v1431 = vunpack.c.h.b16 %v1083
      %v1432 = vunpack.c.l.b16 %v1084
      %v1433 = vunpack.c.h.b16 %v1084
      %v1434 = vunpack.c.l.b16 %v1085
      %v1435 = vunpack.c.h.b16 %v1085
      %v1436 = vunpack.c.l.b16 %v1086
      %v1437 = vunpack.c.l.b16 %v1087
      %v1438 = vunpack.c.h.b16 %v1087
      %v1439 = vunpack.c.l.b16 %v1088
      %v1440 = vunpack.c.h.b16 %v1088
      %v1441 = vunpack.c.l.b16 %v1089
      %v1442 = vunpack.c.h.b16 %v1089
      %v1443 = vunpack.c.l.b16 %v1090
      %v1444 = vunpack.c.l.b16 %v1091
      %v1445 = vunpack.c.h.b16 %v1091
      %v1446 = vunpack.c.l.b16 %v1092
      %v1447 = vunpack.c.h.b16 %v1092
      %v1448 = vunpack.c.l.b16 %v1093
      %v1449 = vunpack.c.h.b16 %v1093
      %v1450 = vunpack.c.l.b16 %v1094
      %v1451 = vunpack.c.l.b16 %v1095
      %v1452 = vunpack.c.h.b16 %v1095
      %v1453 = vunpack.c.l.b16 %v1096
      %v1454 = vunpack.c.h.b16 %v1096
      %v1455 = vunpack.c.l.b16 %v1097
      %v1456 = vunpack.c.h.b16 %v1097
      %v1457 = vunpack.c.l.b16 %v1098
      %v1458 = vunpack.c.l.b16 %v1099
      %v1459 = vunpack.c.h.b16 %v1099
      %v1460 = vunpack.c.l.b16 %v1100
      %v1461 = vunpack.c.h.b16 %v1100
      %v1462 = vunpack.c.l.b16 %v1101
      %v1463 = vunpack.c.h.b16 %v1101
      %v1464 = vunpack.c.l.b16 %v1102
      %v1465 = vunpack.c.l.b16 %v1103
      %v1466 = vunpack.c.h.b16 %v1103
      %v1467 = vunpack.c.l.b16 %v1104
      %v1468 = vunpack.c.h.b16 %v1104
      %v1469 = vunpack.c.l.b16 %v1105
      %v1470 = vunpack.c.h.b16 %v1105
      %v1471 = vunpack.c.l.b16 %v1106
      %v1472 = vunpack.c.l.b16 %v1107
      %v1473 = vunpack.c.h.b16 %v1107
      %v1474 = vunpack.c.l.b16 %v1108
      %v1475 = vunpack.c.h.b16 %v1108
      %v1476 = vunpack.c.l.b16 %v1109
      %v1477 = vunpack.c.h.b16 %v1109
      %v1478 = vunpack.c.l.b16 %v1110
      %v1479 = vunpack.c.l.b16 %v1111
      %v1480 = vunpack.c.h.b16 %v1111
      %v1481 = vunpack.c.l.b16 %v1112
      %v1482 = vunpack.c.h.b16 %v1112
      %v1483 = vunpack.c.l.b16 %v1113
      %v1484 = vunpack.c.h.b16 %v1113
      %v1485 = vunpack.c.l.b16 %v1114
      %v1486 = vunpack.c.l.b16 %v1115
      %v1487 = vunpack.c.h.b16 %v1115
      %v1488 = vunpack.c.l.b16 %v1116
      %v1489 = vunpack.c.h.b16 %v1116
      %v1490 = vunpack.c.l.b16 %v1117
      %v1491 = vunpack.c.h.b16 %v1117
      %v1492 = vunpack.c.l.b16 %v1118
      %v1493 = vunpack.c.l.b16 %v1119
      %v1494 = vunpack.c.h.b16 %v1119
      %v1495 = vunpack.c.l.b16 %v1120
      %v1496 = vunpack.c.h.b16 %v1120
      %v1497 = vunpack.c.l.b16 %v1121
      %v1498 = vunpack.c.h.b16 %v1121
      %v1499 = vunpack.c.l.b16 %v1122
      %v1500 = vunpack.c.l.b16 %v1123
      %v1501 = vunpack.c.h.b16 %v1123
      %v1502 = vunpack.c.l.b16 %v1124
      %v1503 = vunpack.c.h.b16 %v1124
      %v1504 = vunpack.c.l.b16 %v1125
      %v1505 = vunpack.c.h.b16 %v1125
      %v1506 = vunpack.c.l.b16 %v1126
      %v1507 = vunpack.c.l.b16 %v1127
      %v1508 = vunpack.c.h.b16 %v1127
      %v1509 = vunpack.c.l.b16 %v1128
      %v1510 = vunpack.c.h.b16 %v1128
      %v1511 = vunpack.c.l.b16 %v1129
      %v1512 = vunpack.c.h.b16 %v1129
      %v1513 = vunpack.c.l.b16 %v1130
      %v1514 = vunpack.c.l.b16 %v1131
      %v1515 = vunpack.c.h.b16 %v1131
      %v1516 = vunpack.c.l.b16 %v1132
      %v1517 = vunpack.c.h.b16 %v1132
      %v1518 = vunpack.c.l.b16 %v1133
      %v1519 = vunpack.c.h.b16 %v1133
      %v1520 = vunpack.c.l.b16 %v1134
      %v1521 = vunpack.c.l.b16 %v1135
      %v1522 = vunpack.c.h.b16 %v1135
      %v1523 = vunpack.c.l.b16 %v1136
      %v1524 = vunpack.c.h.b16 %v1136
      %v1525 = vunpack.c.l.b16 %v1137
      %v1526 = vunpack.c.h.b16 %v1137
      %v1527 = vunpack.c.l.b16 %v1138
      %v1528 = vpack.c.b16 %v1311, %v1304
      %v1529 = vpack.c.b16 %v1312, %v1305
      %v1530 = vpack.c.b16 %v1313, %v1306
      %v1531 = vpack.c.b16 %v1314, %v1307
      %v1532 = vpack.c.b16 %v1315, %v1308
      %v1533 = vpack.c.b16 %v1316, %v1309
      %v1534 = vpack.c.b16 %v1317, %v1310
      %v1535 = vpack.c.b16 %v1325, %v1318
      %v1536 = vpack.c.b16 %v1326, %v1319
      %v1537 = vpack.c.b16 %v1327, %v1320
      %v1538 = vpack.c.b16 %v1328, %v1321
      %v1539 = vpack.c.b16 %v1329, %v1322
      %v1540 = vpack.c.b16 %v1330, %v1323
      %v1541 = vpack.c.b16 %v1331, %v1324
      %v1542 = vpack.c.b16 %v1339, %v1332
      %v1543 = vpack.c.b16 %v1340, %v1333
      %v1544 = vpack.c.b16 %v1341, %v1334
      %v1545 = vpack.c.b16 %v1342, %v1335
      %v1546 = vpack.c.b16 %v1343, %v1336
      %v1547 = vpack.c.b16 %v1344, %v1337
      %v1548 = vpack.c.b16 %v1345, %v1338
      %v1549 = vpack.c.b16 %v1353, %v1346
      %v1550 = vpack.c.b16 %v1354, %v1347
      %v1551 = vpack.c.b16 %v1355, %v1348
      %v1552 = vpack.c.b16 %v1356, %v1349
      %v1553 = vpack.c.b16 %v1357, %v1350
      %v1554 = vpack.c.b16 %v1358, %v1351
      %v1555 = vpack.c.b16 %v1359, %v1352
      %v1556 = vpack.c.b16 %v1367, %v1360
      %v1557 = vpack.c.b16 %v1368, %v1361
      %v1558 = vpack.c.b16 %v1369, %v1362
      %v1559 = vpack.c.b16 %v1370, %v1363
      %v1560 = vpack.c.b16 %v1371, %v1364
      %v1561 = vpack.c.b16 %v1372, %v1365
      %v1562 = vpack.c.b16 %v1373, %v1366
      %v1563 = vpack.c.b16 %v1381, %v1374
      %v1564 = vpack.c.b16 %v1382, %v1375
      %v1565 = vpack.c.b16 %v1383, %v1376
      %v1566 = vpack.c.b16 %v1384, %v1377
      %v1567 = vpack.c.b16 %v1385, %v1378
      %v1568 = vpack.c.b16 %v1386, %v1379
      %v1569 = vpack.c.b16 %v1387, %v1380
      %v1570 = vpack.c.b16 %v1395, %v1388
      %v1571 = vpack.c.b16 %v1396, %v1389
      %v1572 = vpack.c.b16 %v1397, %v1390
      %v1573 = vpack.c.b16 %v1398, %v1391
      %v1574 = vpack.c.b16 %v1399, %v1392
      %v1575 = vpack.c.b16 %v1400, %v1393
      %v1576 = vpack.c.b16 %v1401, %v1394
      %v1577 = vpack.c.b16 %v1409, %v1402
      %v1578 = vpack.c.b16 %v1410, %v1403
      %v1579 = vpack.c.b16 %v1411, %v1404
      %v1580 = vpack.c.b16 %v1412, %v1405
      %v1581 = vpack.c.b16 %v1413, %v1406
      %v1582 = vpack.c.b16 %v1414, %v1407
      %v1583 = vpack.c.b16 %v1415, %v1408
      %v1584 = vpack.c.b16 %v1423, %v1416
      %v1585 = vpack.c.b16 %v1424, %v1417
      %v1586 = vpack.c.b16 %v1425, %v1418
      %v1587 = vpack.c.b16 %v1426, %v1419
      %v1588 = vpack.c.b16 %v1427, %v1420
      %v1589 = vpack.c.b16 %v1428, %v1421
      %v1590 = vpack.c.b16 %v1429, %v1422
      %v1591 = vpack.c.b16 %v1437, %v1430
      %v1592 = vpack.c.b16 %v1438, %v1431
      %v1593 = vpack.c.b16 %v1439, %v1432
      %v1594 = vpack.c.b16 %v1440, %v1433
      %v1595 = vpack.c.b16 %v1441, %v1434
      %v1596 = vpack.c.b16 %v1442, %v1435
      %v1597 = vpack.c.b16 %v1443, %v1436
      %v1598 = vpack.c.b16 %v1451, %v1444
      %v1599 = vpack.c.b16 %v1452, %v1445
      %v1600 = vpack.c.b16 %v1453, %v1446
      %v1601 = vpack.c.b16 %v1454, %v1447
      %v1602 = vpack.c.b16 %v1455, %v1448
      %v1603 = vpack.c.b16 %v1456, %v1449
      %v1604 = vpack.c.b16 %v1457, %v1450
      %v1605 = vpack.c.b16 %v1465, %v1458
      %v1606 = vpack.c.b16 %v1466, %v1459
      %v1607 = vpack.c.b16 %v1467, %v1460
      %v1608 = vpack.c.b16 %v1468, %v1461
      %v1609 = vpack.c.b16 %v1469, %v1462
      %v1610 = vpack.c.b16 %v1470, %v1463
      %v1611 = vpack.c.b16 %v1471, %v1464
      %v1612 = vpack.c.b16 %v1479, %v1472
      %v1613 = vpack.c.b16 %v1480, %v1473
      %v1614 = vpack.c.b16 %v1481, %v1474
      %v1615 = vpack.c.b16 %v1482, %v1475
      %v1616 = vpack.c.b16 %v1483, %v1476
      %v1617 = vpack.c.b16 %v1484, %v1477
      %v1618 = vpack.c.b16 %v1485, %v1478
      %v1619 = vpack.c.b16 %v1493, %v1486
      %v1620 = vpack.c.b16 %v1494, %v1487
      %v1621 = vpack.c.b16 %v1495, %v1488
      %v1622 = vpack.c.b16 %v1496, %v1489
      %v1623 = vpack.c.b16 %v1497, %v1490
      %v1624 = vpack.c.b16 %v1498, %v1491
      %v1625 = vpack.c.b16 %v1499, %v1492
      %v1626 = vpack.c.b16 %v1507, %v1500
      %v1627 = vpack.c.b16 %v1508, %v1501
      %v1628 = vpack.c.b16 %v1509, %v1502
      %v1629 = vpack.c.b16 %v1510, %v1503
      %v1630 = vpack.c.b16 %v1511, %v1504
      %v1631 = vpack.c.b16 %v1512, %v1505
      %v1632 = vpack.c.b16 %v1513, %v1506
      %v1633 = vpack.c.b16 %v1521, %v1514
      %v1634 = vpack.c.b16 %v1522, %v1515
      %v1635 = vpack.c.b16 %v1523, %v1516
      %v1636 = vpack.c.b16 %v1524, %v1517
      %v1637 = vpack.c.b16 %v1525, %v1518
      %v1638 = vpack.c.b16 %v1526, %v1519
      %v1639 = vpack.c.b16 %v1527, %v1520
      %1752 = vmatprep.subr.bf16.mxu0 %v1578
      %1753 = vmatpush1.bf16.msra.mxu0 %v1577
      %1754 = vmatprep.subr.bf16.mxu0 %v1571
      %1755 = vmatpush1.bf16.msra.mxu0 %v1570
      %1756 = vmatprep.subr.bf16.mxu0 %v1564
      %1757 = vmatpush1.bf16.msra.mxu0 %v1563
      %1758 = vmatprep.subr.bf16.mxu0 %v1557
      %1759 = vmatpush1.bf16.msra.mxu0 %v1556
      %1760 = vmatprep.subr.bf16.mxu0 %v1550
      %1761 = vmatpush1.bf16.msra.mxu0 %v1549
      %1762 = vmatprep.subr.bf16.mxu0 %v1543
      %1763 = vmatpush1.bf16.msra.mxu0 %v1542
      %1764 = vmatprep.subr.bf16.mxu0 %v1536
      %1765 = vmatpush1.bf16.msra.mxu0 %v1535
      %1766 = vmatprep.subr.bf16.mxu0 %v1529
      %1767 = vmatpush1.bf16.msra.mxu0 %v1528
      %1768 = vmatprep.subr.bf16.mxu0 %v1634
      %1769 = vmatpush2.bf16.msra.mxu0 %v1633
      %1770 = vmatprep.subr.bf16.mxu0 %v1627
      %1771 = vmatpush2.bf16.msra.mxu0 %v1626
      %1772 = vmatprep.subr.bf16.mxu0 %v1620
      %1773 = vmatpush2.bf16.msra.mxu0 %v1619
      %1774 = vmatprep.subr.bf16.mxu0 %v1613
      %1775 = vmatpush2.bf16.msra.mxu0 %v1612
      %1776 = vmatprep.subr.bf16.mxu0 %v1606
      %1777 = vmatpush2.bf16.msra.mxu0 %v1605
      %1778 = vmatprep.subr.bf16.mxu0 %v1599
      %1779 = vmatpush2.bf16.msra.mxu0 %v1598
      %1780 = vmatprep.subr.bf16.mxu0 %v1592
      %1781 = vmatpush2.bf16.msra.mxu0 %v1591
      %1782 = vmatprep.subr.bf16.mxu0 %v1585
      %1783 = vmatpush2.bf16.msra.mxu0 %v1584
      %1784 = vmatprep.mubr.bf16.mxu0 %v980
      %1785 = vmatmul.mubr.bf16.gmra.mxu0 %v979
      %v1786 = vpop.f32.mrf.mxu0
      %v1787 = vadd.f32 %v1144, %v1786
      %v1788 = vpop.f32.mrf.mxu0
      %v1789 = vadd.f32 %v1148, %v1788
      %v1790 = vpop.f32.mrf.mxu0
      %v1791 = vadd.f32 %v1144, %v1790
      %v1792 = vpop.f32.mrf.mxu0
      %v1793 = vadd.f32 %v1148, %v1792
      %1794 = vmatprep.mubr.bf16.mxu0 %v982
      %1795 = vmatmul.mubr.bf16.gmra.mxu0 %v981
      %v1796 = vpop.f32.mrf.mxu0
      %v1797 = vadd.f32 %v1144, %v1796
      %v1798 = vpop.f32.mrf.mxu0
      %v1799 = vadd.f32 %v1148, %v1798
      %v1800 = vpop.f32.mrf.mxu0
      %v1801 = vadd.f32 %v1144, %v1800
      %v1802 = vpop.f32.mrf.mxu0
      %v1803 = vadd.f32 %v1148, %v1802
      %1804 = vmatprep.mubr.bf16.mxu0 %v984
      %1805 = vmatmul.mubr.bf16.gmra.mxu0 %v983
      %v1806 = vpop.f32.mrf.mxu0
      %v1807 = vadd.f32 %v1144, %v1806
      %v1808 = vpop.f32.mrf.mxu0
      %v1809 = vadd.f32 %v1148, %v1808
      %v1810 = vpop.f32.mrf.mxu0
      %v1811 = vadd.f32 %v1144, %v1810
      %v1812 = vpop.f32.mrf.mxu0
      %v1813 = vadd.f32 %v1148, %v1812
      %1814 = vmatprep.mubr.bf16.mxu0 %v986
      %1815 = vmatmul.mubr.bf16.gmra.mxu0 %v985
      %v1816 = vpop.f32.mrf.mxu0
      %v1817 = vadd.f32 %v1144, %v1816
      %v1818 = vpop.f32.mrf.mxu0
      %v1819 = vadd.f32 %v1148, %v1818
      %v1820 = vpop.f32.mrf.mxu0
      %v1821 = vadd.f32 %v1144, %v1820
      %v1822 = vpop.f32.mrf.mxu0
      %v1823 = vadd.f32 %v1148, %v1822
      %1824 = vmatprep.mubr.bf16.mxu0 %v988
      %1825 = vmatmul.mubr.bf16.gmra.mxu0 %v987
      %v1826 = vpop.f32.mrf.mxu0
      %v1827 = vadd.f32 %v1144, %v1826
      %v1828 = vpop.f32.mrf.mxu0
      %v1829 = vadd.f32 %v1148, %v1828
      %v1830 = vpop.f32.mrf.mxu0
      %v1831 = vadd.f32 %v1144, %v1830
      %v1832 = vpop.f32.mrf.mxu0
      %v1833 = vadd.f32 %v1148, %v1832
      %1834 = vmatprep.mubr.bf16.mxu0 %v990
      %1835 = vmatmul.mubr.bf16.gmra.mxu0 %v989
      %v1836 = vpop.f32.mrf.mxu0
      %v1837 = vadd.f32 %v1144, %v1836
      %v1838 = vpop.f32.mrf.mxu0
      %v1839 = vadd.f32 %v1148, %v1838
      %v1840 = vpop.f32.mrf.mxu0
      %v1841 = vadd.f32 %v1144, %v1840
      %v1842 = vpop.f32.mrf.mxu0
      %v1843 = vadd.f32 %v1148, %v1842
      %1844 = vmatprep.mubr.bf16.mxu0 %v992
      %1845 = vmatmul.mubr.bf16.gmra.mxu0 %v991
      %v1846 = vpop.f32.mrf.mxu0
      %v1847 = vadd.f32 %v1144, %v1846
      %v1848 = vpop.f32.mrf.mxu0
      %v1849 = vadd.f32 %v1148, %v1848
      %v1850 = vpop.f32.mrf.mxu0
      %v1851 = vadd.f32 %v1144, %v1850
      %v1852 = vpop.f32.mrf.mxu0
      %v1853 = vadd.f32 %v1148, %v1852
      %1854 = vmatprep.mubr.bf16.mxu0 %v994
      %1855 = vmatmul.mubr.bf16.gmra.mxu0 %v993
      %v1856 = vpop.f32.mrf.mxu0
      %v1857 = vadd.f32 %v1144, %v1856
      %v1858 = vpop.f32.mrf.mxu0
      %v1859 = vadd.f32 %v1148, %v1858
      %v1860 = vpop.f32.mrf.mxu0
      %v1861 = vadd.f32 %v1144, %v1860
      %v1862 = vpop.f32.mrf.mxu0
      %v1863 = vadd.f32 %v1148, %v1862
      %1864 = vmatprep.mubr.bf16.mxu0 %v996
      %1865 = vmatmul.mubr.bf16.gmra.mxu0 %v995
      %v1866 = vpop.f32.mrf.mxu0
      %v1867 = vadd.f32 %v1144, %v1866
      %v1868 = vpop.f32.mrf.mxu0
      %v1869 = vadd.f32 %v1148, %v1868
      %v1870 = vpop.f32.mrf.mxu0
      %v1871 = vadd.f32 %v1144, %v1870
      %v1872 = vpop.f32.mrf.mxu0
      %v1873 = vadd.f32 %v1148, %v1872
      %1874 = vmatprep.mubr.bf16.mxu0 %v998
      %1875 = vmatmul.mubr.bf16.gmra.mxu0 %v997
      %v1876 = vpop.f32.mrf.mxu0
      %v1877 = vadd.f32 %v1144, %v1876
      %v1878 = vpop.f32.mrf.mxu0
      %v1879 = vadd.f32 %v1148, %v1878
      %v1880 = vpop.f32.mrf.mxu0
      %v1881 = vadd.f32 %v1144, %v1880
      %v1882 = vpop.f32.mrf.mxu0
      %v1883 = vadd.f32 %v1148, %v1882
      %1884 = vmatprep.mubr.bf16.mxu0 %v1000
      %1885 = vmatmul.mubr.bf16.gmra.mxu0 %v999
      %v1886 = vpop.f32.mrf.mxu0
      %v1887 = vadd.f32 %v1144, %v1886
      %v1888 = vpop.f32.mrf.mxu0
      %v1889 = vadd.f32 %v1148, %v1888
      %v1890 = vpop.f32.mrf.mxu0
      %v1891 = vadd.f32 %v1144, %v1890
      %v1892 = vpop.f32.mrf.mxu0
      %v1893 = vadd.f32 %v1148, %v1892
      %1894 = vmatprep.mubr.bf16.mxu0 %v1002
      %1895 = vmatmul.mubr.bf16.gmra.mxu0 %v1001
      %v1896 = vpop.f32.mrf.mxu0
      %v1897 = vadd.f32 %v1144, %v1896
      %v1898 = vpop.f32.mrf.mxu0
      %v1899 = vadd.f32 %v1148, %v1898
      %v1900 = vpop.f32.mrf.mxu0
      %v1901 = vadd.f32 %v1144, %v1900
      %v1902 = vpop.f32.mrf.mxu0
      %v1903 = vadd.f32 %v1148, %v1902
      %1904 = vmatprep.mubr.bf16.mxu0 %v1004
      %1905 = vmatmul.mubr.bf16.gmra.mxu0 %v1003
      %v1906 = vpop.f32.mrf.mxu0
      %v1907 = vadd.f32 %v1144, %v1906
      %v1908 = vpop.f32.mrf.mxu0
      %v1909 = vadd.f32 %v1148, %v1908
      %v1910 = vpop.f32.mrf.mxu0
      %v1911 = vadd.f32 %v1144, %v1910
      %v1912 = vpop.f32.mrf.mxu0
      %v1913 = vadd.f32 %v1148, %v1912
      %1914 = vmatprep.mubr.bf16.mxu0 %v1006
      %1915 = vmatmul.mubr.bf16.gmra.mxu0 %v1005
      %v1916 = vpop.f32.mrf.mxu0
      %v1917 = vadd.f32 %v1144, %v1916
      %v1918 = vpop.f32.mrf.mxu0
      %v1919 = vadd.f32 %v1148, %v1918
      %v1920 = vpop.f32.mrf.mxu0
      %v1921 = vadd.f32 %v1144, %v1920
      %v1922 = vpop.f32.mrf.mxu0
      %v1923 = vadd.f32 %v1148, %v1922
      %1924 = vmatprep.mubr.bf16.mxu0 %v1008
      %1925 = vmatmul.mubr.bf16.gmra.mxu0 %v1007
      %v1926 = vpop.f32.mrf.mxu0
      %v1927 = vadd.f32 %v1144, %v1926
      %v1928 = vpop.f32.mrf.mxu0
      %v1929 = vadd.f32 %v1148, %v1928
      %v1930 = vpop.f32.mrf.mxu0
      %v1931 = vadd.f32 %v1144, %v1930
      %v1932 = vpop.f32.mrf.mxu0
      %v1933 = vadd.f32 %v1148, %v1932
      %1934 = vmatprep.mubr.bf16.mxu0 %v1010
      %1935 = vmatmul.mubr.bf16.gmra.mxu0 %v1009
      %v1936 = vpop.f32.mrf.mxu0
      %v1937 = vadd.f32 %v1144, %v1936
      %v1938 = vpop.f32.mrf.mxu0
      %v1939 = vadd.f32 %v1148, %v1938
      %v1940 = vpop.f32.mrf.mxu0
      %v1941 = vadd.f32 %v1144, %v1940
      %v1942 = vpop.f32.mrf.mxu0
      %v1943 = vadd.f32 %v1148, %v1942
      %1944 = vdwg.mxu0
      %1945 = vmatprep.subr.bf16.mxu0 %v1580
      %1946 = vmatpush1.bf16.msra.mxu0 %v1579
      %1947 = vmatprep.subr.bf16.mxu0 %v1573
      %1948 = vmatpush1.bf16.msra.mxu0 %v1572
      %1949 = vmatprep.subr.bf16.mxu0 %v1566
      %1950 = vmatpush1.bf16.msra.mxu0 %v1565
      %1951 = vmatprep.subr.bf16.mxu0 %v1559
      %1952 = vmatpush1.bf16.msra.mxu0 %v1558
      %1953 = vmatprep.subr.bf16.mxu0 %v1552
      %1954 = vmatpush1.bf16.msra.mxu0 %v1551
      %1955 = vmatprep.subr.bf16.mxu0 %v1545
      %1956 = vmatpush1.bf16.msra.mxu0 %v1544
      %1957 = vmatprep.subr.bf16.mxu0 %v1538
      %1958 = vmatpush1.bf16.msra.mxu0 %v1537
      %1959 = vmatprep.subr.bf16.mxu0 %v1531
      %1960 = vmatpush1.bf16.msra.mxu0 %v1530
      %1961 = vmatprep.subr.bf16.mxu0 %v1636
      %1962 = vmatpush2.bf16.msra.mxu0 %v1635
      %1963 = vmatprep.subr.bf16.mxu0 %v1629
      %1964 = vmatpush2.bf16.msra.mxu0 %v1628
      %1965 = vmatprep.subr.bf16.mxu0 %v1622
      %1966 = vmatpush2.bf16.msra.mxu0 %v1621
      %1967 = vmatprep.subr.bf16.mxu0 %v1615
      %1968 = vmatpush2.bf16.msra.mxu0 %v1614
      %1969 = vmatprep.subr.bf16.mxu0 %v1608
      %1970 = vmatpush2.bf16.msra.mxu0 %v1607
      %1971 = vmatprep.subr.bf16.mxu0 %v1601
      %1972 = vmatpush2.bf16.msra.mxu0 %v1600
      %1973 = vmatprep.subr.bf16.mxu0 %v1594
      %1974 = vmatpush2.bf16.msra.mxu0 %v1593
      %1975 = vmatprep.subr.bf16.mxu0 %v1587
      %1976 = vmatpush2.bf16.msra.mxu0 %v1586
      %1977 = vmatprep.mubr.bf16.mxu0 %v980
      %1978 = vmatmul.mubr.bf16.gmra.mxu0 %v979
      %v1979 = vpop.f32.mrf.mxu0
      %v1980 = vadd.f32 %v1152, %v1979
      %v1981 = vpop.f32.mrf.mxu0
      %v1982 = vadd.f32 %v1156, %v1981
      %v1983 = vpop.f32.mrf.mxu0
      %v1984 = vadd.f32 %v1152, %v1983
      %v1985 = vpop.f32.mrf.mxu0
      %v1986 = vadd.f32 %v1156, %v1985
      %1987 = vmatprep.mubr.bf16.mxu0 %v982
      %1988 = vmatmul.mubr.bf16.gmra.mxu0 %v981
      %v1989 = vpop.f32.mrf.mxu0
      %v1990 = vadd.f32 %v1152, %v1989
      %v1991 = vpop.f32.mrf.mxu0
      %v1992 = vadd.f32 %v1156, %v1991
      %v1993 = vpop.f32.mrf.mxu0
      %v1994 = vadd.f32 %v1152, %v1993
      %v1995 = vpop.f32.mrf.mxu0
      %v1996 = vadd.f32 %v1156, %v1995
      %1997 = vmatprep.mubr.bf16.mxu0 %v984
      %1998 = vmatmul.mubr.bf16.gmra.mxu0 %v983
      %v1999 = vpop.f32.mrf.mxu0
      %v2000 = vadd.f32 %v1152, %v1999
      %v2001 = vpop.f32.mrf.mxu0
      %v2002 = vadd.f32 %v1156, %v2001
      %v2003 = vpop.f32.mrf.mxu0
      %v2004 = vadd.f32 %v1152, %v2003
      %v2005 = vpop.f32.mrf.mxu0
      %v2006 = vadd.f32 %v1156, %v2005
      %2007 = vmatprep.mubr.bf16.mxu0 %v986
      %2008 = vmatmul.mubr.bf16.gmra.mxu0 %v985
      %v2009 = vpop.f32.mrf.mxu0
      %v2010 = vadd.f32 %v1152, %v2009
      %v2011 = vpop.f32.mrf.mxu0
      %v2012 = vadd.f32 %v1156, %v2011
      %v2013 = vpop.f32.mrf.mxu0
      %v2014 = vadd.f32 %v1152, %v2013
      %v2015 = vpop.f32.mrf.mxu0
      %v2016 = vadd.f32 %v1156, %v2015
      %2017 = vmatprep.mubr.bf16.mxu0 %v988
      %2018 = vmatmul.mubr.bf16.gmra.mxu0 %v987
      %v2019 = vpop.f32.mrf.mxu0
      %v2020 = vadd.f32 %v1152, %v2019
      %v2021 = vpop.f32.mrf.mxu0
      %v2022 = vadd.f32 %v1156, %v2021
      %v2023 = vpop.f32.mrf.mxu0
      %v2024 = vadd.f32 %v1152, %v2023
      %v2025 = vpop.f32.mrf.mxu0
      %v2026 = vadd.f32 %v1156, %v2025
      %2027 = vmatprep.mubr.bf16.mxu0 %v990
      %2028 = vmatmul.mubr.bf16.gmra.mxu0 %v989
      %v2029 = vpop.f32.mrf.mxu0
      %v2030 = vadd.f32 %v1152, %v2029
      %v2031 = vpop.f32.mrf.mxu0
      %v2032 = vadd.f32 %v1156, %v2031
      %v2033 = vpop.f32.mrf.mxu0
      %v2034 = vadd.f32 %v1152, %v2033
      %v2035 = vpop.f32.mrf.mxu0
      %v2036 = vadd.f32 %v1156, %v2035
      %2037 = vmatprep.mubr.bf16.mxu0 %v992
      %2038 = vmatmul.mubr.bf16.gmra.mxu0 %v991
      %v2039 = vpop.f32.mrf.mxu0
      %v2040 = vadd.f32 %v1152, %v2039
      %v2041 = vpop.f32.mrf.mxu0
      %v2042 = vadd.f32 %v1156, %v2041
      %v2043 = vpop.f32.mrf.mxu0
      %v2044 = vadd.f32 %v1152, %v2043
      %v2045 = vpop.f32.mrf.mxu0
      %v2046 = vadd.f32 %v1156, %v2045
      %2047 = vmatprep.mubr.bf16.mxu0 %v994
      %2048 = vmatmul.mubr.bf16.gmra.mxu0 %v993
      %v2049 = vpop.f32.mrf.mxu0
      %v2050 = vadd.f32 %v1152, %v2049
      %v2051 = vpop.f32.mrf.mxu0
      %v2052 = vadd.f32 %v1156, %v2051
      %v2053 = vpop.f32.mrf.mxu0
      %v2054 = vadd.f32 %v1152, %v2053
      %v2055 = vpop.f32.mrf.mxu0
      %v2056 = vadd.f32 %v1156, %v2055
      %2057 = vmatprep.mubr.bf16.mxu0 %v996
      %2058 = vmatmul.mubr.bf16.gmra.mxu0 %v995
      %v2059 = vpop.f32.mrf.mxu0
      %v2060 = vadd.f32 %v1152, %v2059
      %v2061 = vpop.f32.mrf.mxu0
      %v2062 = vadd.f32 %v1156, %v2061
      %v2063 = vpop.f32.mrf.mxu0
      %v2064 = vadd.f32 %v1152, %v2063
      %v2065 = vpop.f32.mrf.mxu0
      %v2066 = vadd.f32 %v1156, %v2065
      %2067 = vmatprep.mubr.bf16.mxu0 %v998
      %2068 = vmatmul.mubr.bf16.gmra.mxu0 %v997
      %v2069 = vpop.f32.mrf.mxu0
      %v2070 = vadd.f32 %v1152, %v2069
      %v2071 = vpop.f32.mrf.mxu0
      %v2072 = vadd.f32 %v1156, %v2071
      %v2073 = vpop.f32.mrf.mxu0
      %v2074 = vadd.f32 %v1152, %v2073
      %v2075 = vpop.f32.mrf.mxu0
      %v2076 = vadd.f32 %v1156, %v2075
      %2077 = vmatprep.mubr.bf16.mxu0 %v1000
      %2078 = vmatmul.mubr.bf16.gmra.mxu0 %v999
      %v2079 = vpop.f32.mrf.mxu0
      %v2080 = vadd.f32 %v1152, %v2079
      %v2081 = vpop.f32.mrf.mxu0
      %v2082 = vadd.f32 %v1156, %v2081
      %v2083 = vpop.f32.mrf.mxu0
      %v2084 = vadd.f32 %v1152, %v2083
      %v2085 = vpop.f32.mrf.mxu0
      %v2086 = vadd.f32 %v1156, %v2085
      %2087 = vmatprep.mubr.bf16.mxu0 %v1002
      %2088 = vmatmul.mubr.bf16.gmra.mxu0 %v1001
      %v2089 = vpop.f32.mrf.mxu0
      %v2090 = vadd.f32 %v1152, %v2089
      %v2091 = vpop.f32.mrf.mxu0
      %v2092 = vadd.f32 %v1156, %v2091
      %v2093 = vpop.f32.mrf.mxu0
      %v2094 = vadd.f32 %v1152, %v2093
      %v2095 = vpop.f32.mrf.mxu0
      %v2096 = vadd.f32 %v1156, %v2095
      %2097 = vmatprep.mubr.bf16.mxu0 %v1004
      %2098 = vmatmul.mubr.bf16.gmra.mxu0 %v1003
      %v2099 = vpop.f32.mrf.mxu0
      %v2100 = vadd.f32 %v1152, %v2099
      %v2101 = vpop.f32.mrf.mxu0
      %v2102 = vadd.f32 %v1156, %v2101
      %v2103 = vpop.f32.mrf.mxu0
      %v2104 = vadd.f32 %v1152, %v2103
      %v2105 = vpop.f32.mrf.mxu0
      %v2106 = vadd.f32 %v1156, %v2105
      %2107 = vmatprep.mubr.bf16.mxu0 %v1006
      %2108 = vmatmul.mubr.bf16.gmra.mxu0 %v1005
      %v2109 = vpop.f32.mrf.mxu0
      %v2110 = vadd.f32 %v1152, %v2109
      %v2111 = vpop.f32.mrf.mxu0
      %v2112 = vadd.f32 %v1156, %v2111
      %v2113 = vpop.f32.mrf.mxu0
      %v2114 = vadd.f32 %v1152, %v2113
      %v2115 = vpop.f32.mrf.mxu0
      %v2116 = vadd.f32 %v1156, %v2115
      %2117 = vmatprep.mubr.bf16.mxu0 %v1008
      %2118 = vmatmul.mubr.bf16.gmra.mxu0 %v1007
      %v2119 = vpop.f32.mrf.mxu0
      %v2120 = vadd.f32 %v1152, %v2119
      %v2121 = vpop.f32.mrf.mxu0
      %v2122 = vadd.f32 %v1156, %v2121
      %v2123 = vpop.f32.mrf.mxu0
      %v2124 = vadd.f32 %v1152, %v2123
      %v2125 = vpop.f32.mrf.mxu0
      %v2126 = vadd.f32 %v1156, %v2125
      %2127 = vmatprep.mubr.bf16.mxu0 %v1010
      %2128 = vmatmul.mubr.bf16.gmra.mxu0 %v1009
      %v2129 = vpop.f32.mrf.mxu0
      %v2130 = vadd.f32 %v1152, %v2129
      %v2131 = vpop.f32.mrf.mxu0
      %v2132 = vadd.f32 %v1156, %v2131
      %v2133 = vpop.f32.mrf.mxu0
      %v2134 = vadd.f32 %v1152, %v2133
      %v2135 = vpop.f32.mrf.mxu0
      %v2136 = vadd.f32 %v1156, %v2135
      %2137 = vdwg.mxu0
      %2138 = vmatprep.subr.bf16.mxu0 %v1582
      %2139 = vmatpush1.bf16.msra.mxu0 %v1581
      %2140 = vmatprep.subr.bf16.mxu0 %v1575
      %2141 = vmatpush1.bf16.msra.mxu0 %v1574
      %2142 = vmatprep.subr.bf16.mxu0 %v1568
      %2143 = vmatpush1.bf16.msra.mxu0 %v1567
      %2144 = vmatprep.subr.bf16.mxu0 %v1561
      %2145 = vmatpush1.bf16.msra.mxu0 %v1560
      %2146 = vmatprep.subr.bf16.mxu0 %v1554
      %2147 = vmatpush1.bf16.msra.mxu0 %v1553
      %2148 = vmatprep.subr.bf16.mxu0 %v1547
      %2149 = vmatpush1.bf16.msra.mxu0 %v1546
      %2150 = vmatprep.subr.bf16.mxu0 %v1540
      %2151 = vmatpush1.bf16.msra.mxu0 %v1539
      %2152 = vmatprep.subr.bf16.mxu0 %v1533
      %2153 = vmatpush1.bf16.msra.mxu0 %v1532
      %2154 = vmatprep.subr.bf16.mxu0 %v1638
      %2155 = vmatpush2.bf16.msra.mxu0 %v1637
      %2156 = vmatprep.subr.bf16.mxu0 %v1631
      %2157 = vmatpush2.bf16.msra.mxu0 %v1630
      %2158 = vmatprep.subr.bf16.mxu0 %v1624
      %2159 = vmatpush2.bf16.msra.mxu0 %v1623
      %2160 = vmatprep.subr.bf16.mxu0 %v1617
      %2161 = vmatpush2.bf16.msra.mxu0 %v1616
      %2162 = vmatprep.subr.bf16.mxu0 %v1610
      %2163 = vmatpush2.bf16.msra.mxu0 %v1609
      %2164 = vmatprep.subr.bf16.mxu0 %v1603
      %2165 = vmatpush2.bf16.msra.mxu0 %v1602
      %2166 = vmatprep.subr.bf16.mxu0 %v1596
      %2167 = vmatpush2.bf16.msra.mxu0 %v1595
      %2168 = vmatprep.subr.bf16.mxu0 %v1589
      %2169 = vmatpush2.bf16.msra.mxu0 %v1588
      %2170 = vmatprep.mubr.bf16.mxu0 %v980
      %2171 = vmatmul.mubr.bf16.gmra.mxu0 %v979
      %v2172 = vpop.f32.mrf.mxu0
      %v2173 = vadd.f32 %v1160, %v2172
      %v2174 = vpop.f32.mrf.mxu0
      %v2175 = vadd.f32 %v1164, %v2174
      %v2176 = vpop.f32.mrf.mxu0
      %v2177 = vadd.f32 %v1160, %v2176
      %v2178 = vpop.f32.mrf.mxu0
      %v2179 = vadd.f32 %v1164, %v2178
      %2180 = vmatprep.mubr.bf16.mxu0 %v982
      %2181 = vmatmul.mubr.bf16.gmra.mxu0 %v981
      %v2182 = vpop.f32.mrf.mxu0
      %v2183 = vadd.f32 %v1160, %v2182
      %v2184 = vpop.f32.mrf.mxu0
      %v2185 = vadd.f32 %v1164, %v2184
      %v2186 = vpop.f32.mrf.mxu0
      %v2187 = vadd.f32 %v1160, %v2186
      %v2188 = vpop.f32.mrf.mxu0
      %v2189 = vadd.f32 %v1164, %v2188
      %2190 = vmatprep.mubr.bf16.mxu0 %v984
      %2191 = vmatmul.mubr.bf16.gmra.mxu0 %v983
      %v2192 = vpop.f32.mrf.mxu0
      %v2193 = vadd.f32 %v1160, %v2192
      %v2194 = vpop.f32.mrf.mxu0
      %v2195 = vadd.f32 %v1164, %v2194
      %v2196 = vpop.f32.mrf.mxu0
      %v2197 = vadd.f32 %v1160, %v2196
      %v2198 = vpop.f32.mrf.mxu0
      %v2199 = vadd.f32 %v1164, %v2198
      %2200 = vmatprep.mubr.bf16.mxu0 %v986
      %2201 = vmatmul.mubr.bf16.gmra.mxu0 %v985
      %v2202 = vpop.f32.mrf.mxu0
      %v2203 = vadd.f32 %v1160, %v2202
      %v2204 = vpop.f32.mrf.mxu0
      %v2205 = vadd.f32 %v1164, %v2204
      %v2206 = vpop.f32.mrf.mxu0
      %v2207 = vadd.f32 %v1160, %v2206
      %v2208 = vpop.f32.mrf.mxu0
      %v2209 = vadd.f32 %v1164, %v2208
      %2210 = vmatprep.mubr.bf16.mxu0 %v988
      %2211 = vmatmul.mubr.bf16.gmra.mxu0 %v987
      %v2212 = vpop.f32.mrf.mxu0
      %v2213 = vadd.f32 %v1160, %v2212
      %v2214 = vpop.f32.mrf.mxu0
      %v2215 = vadd.f32 %v1164, %v2214
      %v2216 = vpop.f32.mrf.mxu0
      %v2217 = vadd.f32 %v1160, %v2216
      %v2218 = vpop.f32.mrf.mxu0
      %v2219 = vadd.f32 %v1164, %v2218
      %2220 = vmatprep.mubr.bf16.mxu0 %v990
      %2221 = vmatmul.mubr.bf16.gmra.mxu0 %v989
      %v2222 = vpop.f32.mrf.mxu0
      %v2223 = vadd.f32 %v1160, %v2222
      %v2224 = vpop.f32.mrf.mxu0
      %v2225 = vadd.f32 %v1164, %v2224
      %v2226 = vpop.f32.mrf.mxu0
      %v2227 = vadd.f32 %v1160, %v2226
      %v2228 = vpop.f32.mrf.mxu0
      %v2229 = vadd.f32 %v1164, %v2228
      %2230 = vmatprep.mubr.bf16.mxu0 %v992
      %2231 = vmatmul.mubr.bf16.gmra.mxu0 %v991
      %v2232 = vpop.f32.mrf.mxu0
      %v2233 = vadd.f32 %v1160, %v2232
      %v2234 = vpop.f32.mrf.mxu0
      %v2235 = vadd.f32 %v1164, %v2234
      %v2236 = vpop.f32.mrf.mxu0
      %v2237 = vadd.f32 %v1160, %v2236
      %v2238 = vpop.f32.mrf.mxu0
      %v2239 = vadd.f32 %v1164, %v2238
      %2240 = vmatprep.mubr.bf16.mxu0 %v994
      %2241 = vmatmul.mubr.bf16.gmra.mxu0 %v993
      %v2242 = vpop.f32.mrf.mxu0
      %v2243 = vadd.f32 %v1160, %v2242
      %v2244 = vpop.f32.mrf.mxu0
      %v2245 = vadd.f32 %v1164, %v2244
      %v2246 = vpop.f32.mrf.mxu0
      %v2247 = vadd.f32 %v1160, %v2246
      %v2248 = vpop.f32.mrf.mxu0
      %v2249 = vadd.f32 %v1164, %v2248
      %2250 = vmatprep.mubr.bf16.mxu0 %v996
      %2251 = vmatmul.mubr.bf16.gmra.mxu0 %v995
      %v2252 = vpop.f32.mrf.mxu0
      %v2253 = vadd.f32 %v1160, %v2252
      %v2254 = vpop.f32.mrf.mxu0
      %v2255 = vadd.f32 %v1164, %v2254
      %v2256 = vpop.f32.mrf.mxu0
      %v2257 = vadd.f32 %v1160, %v2256
      %v2258 = vpop.f32.mrf.mxu0
      %v2259 = vadd.f32 %v1164, %v2258
      %2260 = vmatprep.mubr.bf16.mxu0 %v998
      %2261 = vmatmul.mubr.bf16.gmra.mxu0 %v997
      %v2262 = vpop.f32.mrf.mxu0
      %v2263 = vadd.f32 %v1160, %v2262
      %v2264 = vpop.f32.mrf.mxu0
      %v2265 = vadd.f32 %v1164, %v2264
      %v2266 = vpop.f32.mrf.mxu0
      %v2267 = vadd.f32 %v1160, %v2266
      %v2268 = vpop.f32.mrf.mxu0
      %v2269 = vadd.f32 %v1164, %v2268
      %2270 = vmatprep.mubr.bf16.mxu0 %v1000
      %2271 = vmatmul.mubr.bf16.gmra.mxu0 %v999
      %v2272 = vpop.f32.mrf.mxu0
      %v2273 = vadd.f32 %v1160, %v2272
      %v2274 = vpop.f32.mrf.mxu0
      %v2275 = vadd.f32 %v1164, %v2274
      %v2276 = vpop.f32.mrf.mxu0
      %v2277 = vadd.f32 %v1160, %v2276
      %v2278 = vpop.f32.mrf.mxu0
      %v2279 = vadd.f32 %v1164, %v2278
      %2280 = vmatprep.mubr.bf16.mxu0 %v1002
      %2281 = vmatmul.mubr.bf16.gmra.mxu0 %v1001
      %v2282 = vpop.f32.mrf.mxu0
      %v2283 = vadd.f32 %v1160, %v2282
      %v2284 = vpop.f32.mrf.mxu0
      %v2285 = vadd.f32 %v1164, %v2284
      %v2286 = vpop.f32.mrf.mxu0
      %v2287 = vadd.f32 %v1160, %v2286
      %v2288 = vpop.f32.mrf.mxu0
      %v2289 = vadd.f32 %v1164, %v2288
      %2290 = vmatprep.mubr.bf16.mxu0 %v1004
      %2291 = vmatmul.mubr.bf16.gmra.mxu0 %v1003
      %v2292 = vpop.f32.mrf.mxu0
      %v2293 = vadd.f32 %v1160, %v2292
      %v2294 = vpop.f32.mrf.mxu0
      %v2295 = vadd.f32 %v1164, %v2294
      %v2296 = vpop.f32.mrf.mxu0
      %v2297 = vadd.f32 %v1160, %v2296
      %v2298 = vpop.f32.mrf.mxu0
      %v2299 = vadd.f32 %v1164, %v2298
      %2300 = vmatprep.mubr.bf16.mxu0 %v1006
      %2301 = vmatmul.mubr.bf16.gmra.mxu0 %v1005
      %v2302 = vpop.f32.mrf.mxu0
      %v2303 = vadd.f32 %v1160, %v2302
      %v2304 = vpop.f32.mrf.mxu0
      %v2305 = vadd.f32 %v1164, %v2304
      %v2306 = vpop.f32.mrf.mxu0
      %v2307 = vadd.f32 %v1160, %v2306
      %v2308 = vpop.f32.mrf.mxu0
      %v2309 = vadd.f32 %v1164, %v2308
      %2310 = vmatprep.mubr.bf16.mxu0 %v1008
      %2311 = vmatmul.mubr.bf16.gmra.mxu0 %v1007
      %v2312 = vpop.f32.mrf.mxu0
      %v2313 = vadd.f32 %v1160, %v2312
      %v2314 = vpop.f32.mrf.mxu0
      %v2315 = vadd.f32 %v1164, %v2314
      %v2316 = vpop.f32.mrf.mxu0
      %v2317 = vadd.f32 %v1160, %v2316
      %v2318 = vpop.f32.mrf.mxu0
      %v2319 = vadd.f32 %v1164, %v2318
      %2320 = vmatprep.mubr.bf16.mxu0 %v1010
      %2321 = vmatmul.mubr.bf16.gmra.mxu0 %v1009
      %v2322 = vpop.f32.mrf.mxu0
      %v2323 = vadd.f32 %v1160, %v2322
      %v2324 = vpop.f32.mrf.mxu0
      %v2325 = vadd.f32 %v1164, %v2324
      %v2326 = vpop.f32.mrf.mxu0
      %v2327 = vadd.f32 %v1160, %v2326
      %v2328 = vpop.f32.mrf.mxu0
      %v2329 = vadd.f32 %v1164, %v2328
      %2330 = vdwg.mxu0
      %2331 = vmatprep.subr.bf16.mxu0 0
      %2332 = vmatpush1.bf16.msra.mxu0 %v1583
      %2333 = vmatprep.subr.bf16.mxu0 0
      %2334 = vmatpush1.bf16.msra.mxu0 %v1576
      %2335 = vmatprep.subr.bf16.mxu0 0
      %2336 = vmatpush1.bf16.msra.mxu0 %v1569
      %2337 = vmatprep.subr.bf16.mxu0 0
      %2338 = vmatpush1.bf16.msra.mxu0 %v1562
      %2339 = vmatprep.subr.bf16.mxu0 0
      %2340 = vmatpush1.bf16.msra.mxu0 %v1555
      %2341 = vmatprep.subr.bf16.mxu0 0
      %2342 = vmatpush1.bf16.msra.mxu0 %v1548
      %2343 = vmatprep.subr.bf16.mxu0 0
      %2344 = vmatpush1.bf16.msra.mxu0 %v1541
      %2345 = vmatprep.subr.bf16.mxu0 0
      %2346 = vmatpush1.bf16.msra.mxu0 %v1534
      %2347 = vmatprep.subr.bf16.mxu0 0
      %2348 = vmatpush2.bf16.msra.mxu0 %v1639
      %2349 = vmatprep.subr.bf16.mxu0 0
      %2350 = vmatpush2.bf16.msra.mxu0 %v1632
      %2351 = vmatprep.subr.bf16.mxu0 0
      %2352 = vmatpush2.bf16.msra.mxu0 %v1625
      %2353 = vmatprep.subr.bf16.mxu0 0
      %2354 = vmatpush2.bf16.msra.mxu0 %v1618
      %2355 = vmatprep.subr.bf16.mxu0 0
      %2356 = vmatpush2.bf16.msra.mxu0 %v1611
      %2357 = vmatprep.subr.bf16.mxu0 0
      %2358 = vmatpush2.bf16.msra.mxu0 %v1604
      %2359 = vmatprep.subr.bf16.mxu0 0
      %2360 = vmatpush2.bf16.msra.mxu0 %v1597
      %2361 = vmatprep.subr.bf16.mxu0 0
      %2362 = vmatpush2.bf16.msra.mxu0 %v1590
      %2363 = vmatprep.mubr.bf16.mxu0 %v980
      %2364 = vmatmul.mubr.bf16.gmra.mxu0 %v979
      %v2365 = vpop.f32.mrf.mxu0
      %v2366 = vadd.f32 %v1168, %v2365
      %v2367 = vpop.f32.mrf.mxu0
      %v2368 = vpop.f32.mrf.mxu0
      %v2369 = vadd.f32 %v1168, %v2368
      %v2370 = vpop.f32.mrf.mxu0
      %2371 = vmatprep.mubr.bf16.mxu0 %v982
      %2372 = vmatmul.mubr.bf16.gmra.mxu0 %v981
      %v2373 = vpop.f32.mrf.mxu0
      %v2374 = vadd.f32 %v1168, %v2373
      %v2375 = vpop.f32.mrf.mxu0
      %v2376 = vpop.f32.mrf.mxu0
      %v2377 = vadd.f32 %v1168, %v2376
      %v2378 = vpop.f32.mrf.mxu0
      %2379 = vmatprep.mubr.bf16.mxu0 %v984
      %2380 = vmatmul.mubr.bf16.gmra.mxu0 %v983
      %v2381 = vpop.f32.mrf.mxu0
      %v2382 = vadd.f32 %v1168, %v2381
      %v2383 = vpop.f32.mrf.mxu0
      %v2384 = vpop.f32.mrf.mxu0
      %v2385 = vadd.f32 %v1168, %v2384
      %v2386 = vpop.f32.mrf.mxu0
      %2387 = vmatprep.mubr.bf16.mxu0 %v986
      %2388 = vmatmul.mubr.bf16.gmra.mxu0 %v985
      %v2389 = vpop.f32.mrf.mxu0
      %v2390 = vadd.f32 %v1168, %v2389
      %v2391 = vpop.f32.mrf.mxu0
      %v2392 = vpop.f32.mrf.mxu0
      %v2393 = vadd.f32 %v1168, %v2392
      %v2394 = vpop.f32.mrf.mxu0
      %2395 = vmatprep.mubr.bf16.mxu0 %v988
      %2396 = vmatmul.mubr.bf16.gmra.mxu0 %v987
      %v2397 = vpop.f32.mrf.mxu0
      %v2398 = vadd.f32 %v1168, %v2397
      %v2399 = vpop.f32.mrf.mxu0
      %v2400 = vpop.f32.mrf.mxu0
      %v2401 = vadd.f32 %v1168, %v2400
      %v2402 = vpop.f32.mrf.mxu0
      %2403 = vmatprep.mubr.bf16.mxu0 %v990
      %2404 = vmatmul.mubr.bf16.gmra.mxu0 %v989
      %v2405 = vpop.f32.mrf.mxu0
      %v2406 = vadd.f32 %v1168, %v2405
      %v2407 = vpop.f32.mrf.mxu0
      %v2408 = vpop.f32.mrf.mxu0
      %v2409 = vadd.f32 %v1168, %v2408
      %v2410 = vpop.f32.mrf.mxu0
      %2411 = vmatprep.mubr.bf16.mxu0 %v992
      %2412 = vmatmul.mubr.bf16.gmra.mxu0 %v991
      %v2413 = vpop.f32.mrf.mxu0
      %v2414 = vadd.f32 %v1168, %v2413
      %v2415 = vpop.f32.mrf.mxu0
      %v2416 = vpop.f32.mrf.mxu0
      %v2417 = vadd.f32 %v1168, %v2416
      %v2418 = vpop.f32.mrf.mxu0
      %2419 = vmatprep.mubr.bf16.mxu0 %v994
      %2420 = vmatmul.mubr.bf16.gmra.mxu0 %v993
      %v2421 = vpop.f32.mrf.mxu0
      %v2422 = vadd.f32 %v1168, %v2421
      %v2423 = vpop.f32.mrf.mxu0
      %v2424 = vpop.f32.mrf.mxu0
      %v2425 = vadd.f32 %v1168, %v2424
      %v2426 = vpop.f32.mrf.mxu0
      %2427 = vmatprep.mubr.bf16.mxu0 %v996
      %2428 = vmatmul.mubr.bf16.gmra.mxu0 %v995
      %v2429 = vpop.f32.mrf.mxu0
      %v2430 = vadd.f32 %v1168, %v2429
      %v2431 = vpop.f32.mrf.mxu0
      %v2432 = vpop.f32.mrf.mxu0
      %v2433 = vadd.f32 %v1168, %v2432
      %v2434 = vpop.f32.mrf.mxu0
      %2435 = vmatprep.mubr.bf16.mxu0 %v998
      %2436 = vmatmul.mubr.bf16.gmra.mxu0 %v997
      %v2437 = vpop.f32.mrf.mxu0
      %v2438 = vadd.f32 %v1168, %v2437
      %v2439 = vpop.f32.mrf.mxu0
      %v2440 = vpop.f32.mrf.mxu0
      %v2441 = vadd.f32 %v1168, %v2440
      %v2442 = vpop.f32.mrf.mxu0
      %2443 = vmatprep.mubr.bf16.mxu0 %v1000
      %2444 = vmatmul.mubr.bf16.gmra.mxu0 %v999
      %v2445 = vpop.f32.mrf.mxu0
      %v2446 = vadd.f32 %v1168, %v2445
      %v2447 = vpop.f32.mrf.mxu0
      %v2448 = vpop.f32.mrf.mxu0
      %v2449 = vadd.f32 %v1168, %v2448
      %v2450 = vpop.f32.mrf.mxu0
      %2451 = vmatprep.mubr.bf16.mxu0 %v1002
      %2452 = vmatmul.mubr.bf16.gmra.mxu0 %v1001
      %v2453 = vpop.f32.mrf.mxu0
      %v2454 = vadd.f32 %v1168, %v2453
      %v2455 = vpop.f32.mrf.mxu0
      %v2456 = vpop.f32.mrf.mxu0
      %v2457 = vadd.f32 %v1168, %v2456
      %v2458 = vpop.f32.mrf.mxu0
      %2459 = vmatprep.mubr.bf16.mxu0 %v1004
      %2460 = vmatmul.mubr.bf16.gmra.mxu0 %v1003
      %v2461 = vpop.f32.mrf.mxu0
      %v2462 = vadd.f32 %v1168, %v2461
      %v2463 = vpop.f32.mrf.mxu0
      %v2464 = vpop.f32.mrf.mxu0
      %v2465 = vadd.f32 %v1168, %v2464
      %v2466 = vpop.f32.mrf.mxu0
      %2467 = vmatprep.mubr.bf16.mxu0 %v1006
      %2468 = vmatmul.mubr.bf16.gmra.mxu0 %v1005
      %v2469 = vpop.f32.mrf.mxu0
      %v2470 = vadd.f32 %v1168, %v2469
      %v2471 = vpop.f32.mrf.mxu0
      %v2472 = vpop.f32.mrf.mxu0
      %v2473 = vadd.f32 %v1168, %v2472
      %v2474 = vpop.f32.mrf.mxu0
      %2475 = vmatprep.mubr.bf16.mxu0 %v1008
      %2476 = vmatmul.mubr.bf16.gmra.mxu0 %v1007
      %v2477 = vpop.f32.mrf.mxu0
      %v2478 = vadd.f32 %v1168, %v2477
      %v2479 = vpop.f32.mrf.mxu0
      %v2480 = vpop.f32.mrf.mxu0
      %v2481 = vadd.f32 %v1168, %v2480
      %v2482 = vpop.f32.mrf.mxu0
      %2483 = vmatprep.mubr.bf16.mxu0 %v1010
      %2484 = vmatmul.mubr.bf16.gmra.mxu0 %v1009
      %v2485 = vpop.f32.mrf.mxu0
      %v2486 = vadd.f32 %v1168, %v2485
      %v2487 = vpop.f32.mrf.mxu0
      %v2488 = vpop.f32.mrf.mxu0
      %v2489 = vadd.f32 %v1168, %v2488
      %v2490 = vpop.f32.mrf.mxu0
      %2491 = vdwg.mxu0
      %2492 = vst [vmem:[%s282] sm:$0xff] %v1787
      %2493 = vst [vmem:[%s282 + $0x8] sm:$0xff] %v1789
      %2494 = vst [vmem:[%s282 + $0x10] sm:$0xff] %v1980
      %2495 = vst [vmem:[%s282 + $0x18] sm:$0xff] %v1982
      %2496 = vst [vmem:[%s282 + $0x20] sm:$0xff] %v2173
      %2497 = vst [vmem:[%s282 + $0x28] sm:$0xff] %v2175
      %2498 = vst [vmem:[%s282 + $0x30] sm:$0xff] %v2366
      %2499 = vst [vmem:[%s282 + $0x38] sm:$0xff] %v1791
      %2500 = vst [vmem:[%s282 + $0x40] sm:$0xff] %v1793
      %2501 = vst [vmem:[%s282 + $0x48] sm:$0xff] %v1984
      %2502 = vst [vmem:[%s282 + $0x50] sm:$0xff] %v1986
      %2503 = vst [vmem:[%s282 + $0x58] sm:$0xff] %v2177
      %2504 = vst [vmem:[%s282 + $0x60] sm:$0xff] %v2179
      %2505 = vst [vmem:[%s282 + $0x68] sm:$0xff] %v2369
      %2506 = vst [vmem:[%s282 + $0x70] sm:$0xff] %v1797
      %2507 = vst [vmem:[%s282 + $0x78] sm:$0xff] %v1799
      %2508 = vst [vmem:[%s282 + $0x80] sm:$0xff] %v1990
      %2509 = vst [vmem:[%s282 + $0x88] sm:$0xff] %v1992
      %2510 = vst [vmem:[%s282 + $0x90] sm:$0xff] %v2183
      %2511 = vst [vmem:[%s282 + $0x98] sm:$0xff] %v2185
      %2512 = vst [vmem:[%s282 + $0xa0] sm:$0xff] %v2374
      %2513 = vst [vmem:[%s282 + $0xa8] sm:$0xff] %v1801
      %2514 = vst [vmem:[%s282 + $0xb0] sm:$0xff] %v1803
      %2515 = vst [vmem:[%s282 + $0xb8] sm:$0xff] %v1994
      %2516 = vst [vmem:[%s282 + $0xc0] sm:$0xff] %v1996
      %2517 = vst [vmem:[%s282 + $0xc8] sm:$0xff] %v2187
      %2518 = vst [vmem:[%s282 + $0xd0] sm:$0xff] %v2189
      %2519 = vst [vmem:[%s282 + $0xd8] sm:$0xff] %v2377
      %2520 = vst [vmem:[%s282 + $0xe0] sm:$0xff] %v1807
      %2521 = vst [vmem:[%s282 + $0xe8] sm:$0xff] %v1809
      %2522 = vst [vmem:[%s282 + $0xf0] sm:$0xff] %v2000
      %2523 = vst [vmem:[%s282 + $0xf8] sm:$0xff] %v2002
      %2524 = vst [vmem:[%s282 + $0x100] sm:$0xff] %v2193
      %2525 = vst [vmem:[%s282 + $0x108] sm:$0xff] %v2195
      %2526 = vst [vmem:[%s282 + $0x110] sm:$0xff] %v2382
      %2527 = vst [vmem:[%s282 + $0x118] sm:$0xff] %v1811
      %2528 = vst [vmem:[%s282 + $0x120] sm:$0xff] %v1813
      %2529 = vst [vmem:[%s282 + $0x128] sm:$0xff] %v2004
      %2530 = vst [vmem:[%s282 + $0x130] sm:$0xff] %v2006
      %2531 = vst [vmem:[%s282 + $0x138] sm:$0xff] %v2197
      %2532 = vst [vmem:[%s282 + $0x140] sm:$0xff] %v2199
      %2533 = vst [vmem:[%s282 + $0x148] sm:$0xff] %v2385
      %2534 = vst [vmem:[%s282 + $0x150] sm:$0xff] %v1817
      %2535 = vst [vmem:[%s282 + $0x158] sm:$0xff] %v1819
      %2536 = vst [vmem:[%s282 + $0x160] sm:$0xff] %v2010
      %2537 = vst [vmem:[%s282 + $0x168] sm:$0xff] %v2012
      %2538 = vst [vmem:[%s282 + $0x170] sm:$0xff] %v2203
      %2539 = vst [vmem:[%s282 + $0x178] sm:$0xff] %v2205
      %2540 = vst [vmem:[%s282 + $0x180] sm:$0xff] %v2390
      %2541 = vst [vmem:[%s282 + $0x188] sm:$0xff] %v1821
      %2542 = vst [vmem:[%s282 + $0x190] sm:$0xff] %v1823
      %2543 = vst [vmem:[%s282 + $0x198] sm:$0xff] %v2014
      %2544 = vst [vmem:[%s282 + $0x1a0] sm:$0xff] %v2016
      %2545 = vst [vmem:[%s282 + $0x1a8] sm:$0xff] %v2207
      %2546 = vst [vmem:[%s282 + $0x1b0] sm:$0xff] %v2209
      %2547 = vst [vmem:[%s282 + $0x1b8] sm:$0xff] %v2393
      %2548 = vst [vmem:[%s282 + $0x1c0] sm:$0xff] %v1827
      %2549 = vst [vmem:[%s282 + $0x1c8] sm:$0xff] %v1829
      %2550 = vst [vmem:[%s282 + $0x1d0] sm:$0xff] %v2020
      %2551 = vst [vmem:[%s282 + $0x1d8] sm:$0xff] %v2022
      %2552 = vst [vmem:[%s282 + $0x1e0] sm:$0xff] %v2213
      %2553 = vst [vmem:[%s282 + $0x1e8] sm:$0xff] %v2215
      %2554 = vst [vmem:[%s282 + $0x1f0] sm:$0xff] %v2398
      %2555 = vst [vmem:[%s282 + $0x1f8] sm:$0xff] %v1831
      %2556 = vst [vmem:[%s282 + $0x200] sm:$0xff] %v1833
      %2557 = vst [vmem:[%s282 + $0x208] sm:$0xff] %v2024
      %2558 = vst [vmem:[%s282 + $0x210] sm:$0xff] %v2026
      %2559 = vst [vmem:[%s282 + $0x218] sm:$0xff] %v2217
      %2560 = vst [vmem:[%s282 + $0x220] sm:$0xff] %v2219
      %2561 = vst [vmem:[%s282 + $0x228] sm:$0xff] %v2401
      %2562 = vst [vmem:[%s282 + $0x230] sm:$0xff] %v1837
      %2563 = vst [vmem:[%s282 + $0x238] sm:$0xff] %v1839
      %2564 = vst [vmem:[%s282 + $0x240] sm:$0xff] %v2030
      %2565 = vst [vmem:[%s282 + $0x248] sm:$0xff] %v2032
      %2566 = vst [vmem:[%s282 + $0x250] sm:$0xff] %v2223
      %2567 = vst [vmem:[%s282 + $0x258] sm:$0xff] %v2225
      %2568 = vst [vmem:[%s282 + $0x260] sm:$0xff] %v2406
      %2569 = vst [vmem:[%s282 + $0x268] sm:$0xff] %v1841
      %2570 = vst [vmem:[%s282 + $0x270] sm:$0xff] %v1843
      %2571 = vst [vmem:[%s282 + $0x278] sm:$0xff] %v2034
      %2572 = vst [vmem:[%s282 + $0x280] sm:$0xff] %v2036
      %2573 = vst [vmem:[%s282 + $0x288] sm:$0xff] %v2227
      %2574 = vst [vmem:[%s282 + $0x290] sm:$0xff] %v2229
      %2575 = vst [vmem:[%s282 + $0x298] sm:$0xff] %v2409
      %2576 = vst [vmem:[%s282 + $0x2a0] sm:$0xff] %v1847
      %2577 = vst [vmem:[%s282 + $0x2a8] sm:$0xff] %v1849
      %2578 = vst [vmem:[%s282 + $0x2b0] sm:$0xff] %v2040
      %2579 = vst [vmem:[%s282 + $0x2b8] sm:$0xff] %v2042
      %2580 = vst [vmem:[%s282 + $0x2c0] sm:$0xff] %v2233
      %2581 = vst [vmem:[%s282 + $0x2c8] sm:$0xff] %v2235
      %2582 = vst [vmem:[%s282 + $0x2d0] sm:$0xff] %v2414
      %2583 = vst [vmem:[%s282 + $0x2d8] sm:$0xff] %v1851
      %2584 = vst [vmem:[%s282 + $0x2e0] sm:$0xff] %v1853
      %2585 = vst [vmem:[%s282 + $0x2e8] sm:$0xff] %v2044
      %2586 = vst [vmem:[%s282 + $0x2f0] sm:$0xff] %v2046
      %2587 = vst [vmem:[%s282 + $0x2f8] sm:$0xff] %v2237
      %2588 = vst [vmem:[%s282 + $0x300] sm:$0xff] %v2239
      %2589 = vst [vmem:[%s282 + $0x308] sm:$0xff] %v2417
      %2590 = vst [vmem:[%s282 + $0x310] sm:$0xff] %v1857
      %2591 = vst [vmem:[%s282 + $0x318] sm:$0xff] %v1859
      %2592 = vst [vmem:[%s282 + $0x320] sm:$0xff] %v2050
      %2593 = vst [vmem:[%s282 + $0x328] sm:$0xff] %v2052
      %2594 = vst [vmem:[%s282 + $0x330] sm:$0xff] %v2243
      %2595 = vst [vmem:[%s282 + $0x338] sm:$0xff] %v2245
      %2596 = vst [vmem:[%s282 + $0x340] sm:$0xff] %v2422
      %2597 = vst [vmem:[%s282 + $0x348] sm:$0xff] %v1861
      %2598 = vst [vmem:[%s282 + $0x350] sm:$0xff] %v1863
      %2599 = vst [vmem:[%s282 + $0x358] sm:$0xff] %v2054
      %2600 = vst [vmem:[%s282 + $0x360] sm:$0xff] %v2056
      %2601 = vst [vmem:[%s282 + $0x368] sm:$0xff] %v2247
      %2602 = vst [vmem:[%s282 + $0x370] sm:$0xff] %v2249
      %2603 = vst [vmem:[%s282 + $0x378] sm:$0xff] %v2425
      %2604 = vst [vmem:[%s282 + $0x380] sm:$0xff] %v1867
      %2605 = vst [vmem:[%s282 + $0x388] sm:$0xff] %v1869
      %2606 = vst [vmem:[%s282 + $0x390] sm:$0xff] %v2060
      %2607 = vst [vmem:[%s282 + $0x398] sm:$0xff] %v2062
      %2608 = vst [vmem:[%s282 + $0x3a0] sm:$0xff] %v2253
      %2609 = vst [vmem:[%s282 + $0x3a8] sm:$0xff] %v2255
      %2610 = vst [vmem:[%s282 + $0x3b0] sm:$0xff] %v2430
      %2611 = vst [vmem:[%s282 + $0x3b8] sm:$0xff] %v1871
      %2612 = vst [vmem:[%s282 + $0x3c0] sm:$0xff] %v1873
      %2613 = vst [vmem:[%s282 + $0x3c8] sm:$0xff] %v2064
      %2614 = vst [vmem:[%s282 + $0x3d0] sm:$0xff] %v2066
      %2615 = vst [vmem:[%s282 + $0x3d8] sm:$0xff] %v2257
      %2616 = vst [vmem:[%s282 + $0x3e0] sm:$0xff] %v2259
      %2617 = vst [vmem:[%s282 + $0x3e8] sm:$0xff] %v2433
      %2618 = vst [vmem:[%s282 + $0x3f0] sm:$0xff] %v1877
      %2619 = vst [vmem:[%s282 + $0x3f8] sm:$0xff] %v1879
      %2620 = vst [vmem:[%s282 + $0x400] sm:$0xff] %v2070
      %2621 = vst [vmem:[%s282 + $0x408] sm:$0xff] %v2072
      %2622 = vst [vmem:[%s282 + $0x410] sm:$0xff] %v2263
      %2623 = vst [vmem:[%s282 + $0x418] sm:$0xff] %v2265
      %2624 = vst [vmem:[%s282 + $0x420] sm:$0xff] %v2438
      %2625 = vst [vmem:[%s282 + $0x428] sm:$0xff] %v1881
      %2626 = vst [vmem:[%s282 + $0x430] sm:$0xff] %v1883
      %2627 = vst [vmem:[%s282 + $0x438] sm:$0xff] %v2074
      %2628 = vst [vmem:[%s282 + $0x440] sm:$0xff] %v2076
      %2629 = vst [vmem:[%s282 + $0x448] sm:$0xff] %v2267
      %2630 = vst [vmem:[%s282 + $0x450] sm:$0xff] %v2269
      %2631 = vst [vmem:[%s282 + $0x458] sm:$0xff] %v2441
      %2632 = vst [vmem:[%s282 + $0x460] sm:$0xff] %v1887
      %2633 = vst [vmem:[%s282 + $0x468] sm:$0xff] %v1889
      %2634 = vst [vmem:[%s282 + $0x470] sm:$0xff] %v2080
      %2635 = vst [vmem:[%s282 + $0x478] sm:$0xff] %v2082
      %2636 = vst [vmem:[%s282 + $0x480] sm:$0xff] %v2273
      %2637 = vst [vmem:[%s282 + $0x488] sm:$0xff] %v2275
      %2638 = vst [vmem:[%s282 + $0x490] sm:$0xff] %v2446
      %2639 = vst [vmem:[%s282 + $0x498] sm:$0xff] %v1891
      %2640 = vst [vmem:[%s282 + $0x4a0] sm:$0xff] %v1893
      %2641 = vst [vmem:[%s282 + $0x4a8] sm:$0xff] %v2084
      %2642 = vst [vmem:[%s282 + $0x4b0] sm:$0xff] %v2086
      %2643 = vst [vmem:[%s282 + $0x4b8] sm:$0xff] %v2277
      %2644 = vst [vmem:[%s282 + $0x4c0] sm:$0xff] %v2279
      %2645 = vst [vmem:[%s282 + $0x4c8] sm:$0xff] %v2449
      %2646 = vst [vmem:[%s282 + $0x4d0] sm:$0xff] %v1897
      %2647 = vst [vmem:[%s282 + $0x4d8] sm:$0xff] %v1899
      %2648 = vst [vmem:[%s282 + $0x4e0] sm:$0xff] %v2090
      %2649 = vst [vmem:[%s282 + $0x4e8] sm:$0xff] %v2092
      %2650 = vst [vmem:[%s282 + $0x4f0] sm:$0xff] %v2283
      %2651 = vst [vmem:[%s282 + $0x4f8] sm:$0xff] %v2285
      %2652 = vst [vmem:[%s282 + $0x500] sm:$0xff] %v2454
      %2653 = vst [vmem:[%s282 + $0x508] sm:$0xff] %v1901
      %2654 = vst [vmem:[%s282 + $0x510] sm:$0xff] %v1903
      %2655 = vst [vmem:[%s282 + $0x518] sm:$0xff] %v2094
      %2656 = vst [vmem:[%s282 + $0x520] sm:$0xff] %v2096
      %2657 = vst [vmem:[%s282 + $0x528] sm:$0xff] %v2287
      %2658 = vst [vmem:[%s282 + $0x530] sm:$0xff] %v2289
      %2659 = vst [vmem:[%s282 + $0x538] sm:$0xff] %v2457
      %2660 = vst [vmem:[%s282 + $0x540] sm:$0xff] %v1907
      %2661 = vst [vmem:[%s282 + $0x548] sm:$0xff] %v1909
      %2662 = vst [vmem:[%s282 + $0x550] sm:$0xff] %v2100
      %2663 = vst [vmem:[%s282 + $0x558] sm:$0xff] %v2102
      %2664 = vst [vmem:[%s282 + $0x560] sm:$0xff] %v2293
      %2665 = vst [vmem:[%s282 + $0x568] sm:$0xff] %v2295
      %2666 = vst [vmem:[%s282 + $0x570] sm:$0xff] %v2462
      %2667 = vst [vmem:[%s282 + $0x578] sm:$0xff] %v1911
      %2668 = vst [vmem:[%s282 + $0x580] sm:$0xff] %v1913
      %2669 = vst [vmem:[%s282 + $0x588] sm:$0xff] %v2104
      %2670 = vst [vmem:[%s282 + $0x590] sm:$0xff] %v2106
      %2671 = vst [vmem:[%s282 + $0x598] sm:$0xff] %v2297
      %2672 = vst [vmem:[%s282 + $0x5a0] sm:$0xff] %v2299
      %2673 = vst [vmem:[%s282 + $0x5a8] sm:$0xff] %v2465
      %2674 = vst [vmem:[%s282 + $0x5b0] sm:$0xff] %v1917
      %2675 = vst [vmem:[%s282 + $0x5b8] sm:$0xff] %v1919
      %2676 = vst [vmem:[%s282 + $0x5c0] sm:$0xff] %v2110
      %2677 = vst [vmem:[%s282 + $0x5c8] sm:$0xff] %v2112
      %2678 = vst [vmem:[%s282 + $0x5d0] sm:$0xff] %v2303
      %2679 = vst [vmem:[%s282 + $0x5d8] sm:$0xff] %v2305
      %2680 = vst [vmem:[%s282 + $0x5e0] sm:$0xff] %v2470
      %2681 = vst [vmem:[%s282 + $0x5e8] sm:$0xff] %v1921
      %2682 = vst [vmem:[%s282 + $0x5f0] sm:$0xff] %v1923
      %2683 = vst [vmem:[%s282 + $0x5f8] sm:$0xff] %v2114
      %2684 = vst [vmem:[%s282 + $0x600] sm:$0xff] %v2116
      %2685 = vst [vmem:[%s282 + $0x608] sm:$0xff] %v2307
      %2686 = vst [vmem:[%s282 + $0x610] sm:$0xff] %v2309
      %2687 = vst [vmem:[%s282 + $0x618] sm:$0xff] %v2473
      %2688 = vst [vmem:[%s282 + $0x620] sm:$0xff] %v1927
      %2689 = vst [vmem:[%s282 + $0x628] sm:$0xff] %v1929
      %2690 = vst [vmem:[%s282 + $0x630] sm:$0xff] %v2120
      %2691 = vst [vmem:[%s282 + $0x638] sm:$0xff] %v2122
      %2692 = vst [vmem:[%s282 + $0x640] sm:$0xff] %v2313
      %2693 = vst [vmem:[%s282 + $0x648] sm:$0xff] %v2315
      %2694 = vst [vmem:[%s282 + $0x650] sm:$0xff] %v2478
      %2695 = vst [vmem:[%s282 + $0x658] sm:$0xff] %v1931
      %2696 = vst [vmem:[%s282 + $0x660] sm:$0xff] %v1933
      %2697 = vst [vmem:[%s282 + $0x668] sm:$0xff] %v2124
      %2698 = vst [vmem:[%s282 + $0x670] sm:$0xff] %v2126
      %2699 = vst [vmem:[%s282 + $0x678] sm:$0xff] %v2317
      %2700 = vst [vmem:[%s282 + $0x680] sm:$0xff] %v2319
      %2701 = vst [vmem:[%s282 + $0x688] sm:$0xff] %v2481
      %2702 = vst [vmem:[%s282 + $0x690] sm:$0xff] %v1937
      %2703 = vst [vmem:[%s282 + $0x698] sm:$0xff] %v1939
      %2704 = vst [vmem:[%s282 + $0x6a0] sm:$0xff] %v2130
      %2705 = vst [vmem:[%s282 + $0x6a8] sm:$0xff] %v2132
      %2706 = vst [vmem:[%s282 + $0x6b0] sm:$0xff] %v2323
      %2707 = vst [vmem:[%s282 + $0x6b8] sm:$0xff] %v2325
      %2708 = vst [vmem:[%s282 + $0x6c0] sm:$0xff] %v2486
      %2709 = vst [vmem:[%s282 + $0x6c8] sm:$0xff] %v1941
      %2710 = vst [vmem:[%s282 + $0x6d0] sm:$0xff] %v1943
      %2711 = vst [vmem:[%s282 + $0x6d8] sm:$0xff] %v2134
      %2712 = vst [vmem:[%s282 + $0x6e0] sm:$0xff] %v2136
      %2713 = vst [vmem:[%s282 + $0x6e8] sm:$0xff] %v2327
      %2714 = vst [vmem:[%s282 + $0x6f0] sm:$0xff] %v2329
      %2715 = vst [vmem:[%s282 + $0x6f8] sm:$0xff] %v2489
      %s2716 = smul.u32 32, %s18
      %p2717 = scmp.lt.s32.totalorder %s2716, 63
      %s2718 = scalar_select %p2717, %s2716, 63
      %s2719 = smul.addr %s2718, 7
      %s2720 = smul.addr %s2719, 8
      %s2721 = scalar_lea.vmem %s7, %s2720
      // Predicated region
      $region49: #{bernoulli_decoder_logits.1} parent=47 // pred_check
        %p2722 = pneg %p188
      $region50: #{bernoulli_decoder_logits.1} parent=47 // pred_check_branch
        %2724 = sbr.rel (%p2722) target = $region52
      $region51: #{bernoulli_decoder_logits.1} parent=47 // pred_region
        %s2725 = smul.u32 32, %s18
      $region52: #{bernoulli_decoder_logits.1} parent=47 // pred_fallthru
        _
    $region48: #{bernoulli_decoder_logits.1} parent=5 // pred_fallthru
      _
    %p2726 = scmp.le.s32.totalorder 2, %s13
    // Predicated region
    $region53: #{bernoulli_decoder_logits.1} parent=5 // pred_check
      %p2727 = pneg %p2726
    $region54: #{bernoulli_decoder_logits.1} parent=5 // pred_check_branch
      %2729 = sbr.rel (%p2727) target = $region56
    $region55: #{bernoulli_decoder_logits.1} parent=5 // pred_region
      %s2730 = ssub.s32 %s13, 2
      // Predicated region
      $region57: #{bernoulli_decoder_logits.1} parent=55 // pred_check
        %p2731 = pneg %p194
      $region58: #{bernoulli_decoder_logits.1} parent=55 // pred_check_branch
        %2733 = sbr.rel (%p2731) target = $region60
      $region59: #{bernoulli_decoder_logits.1} parent=55 // pred_region
        %s2734 = smul.u32 32, %s19
        %p2735 = scmp.lt.s32.totalorder %s2734, 63
        %s2736 = scalar_select %p2735, %s2734, 63
        %s2737 = smul.addr %s2736, 7
        %s2738 = smul.addr %s2737, 8
        %s2739 = scalar_lea.vmem %s7, %s2738
      $region60: #{bernoulli_decoder_logits.1} parent=55 // pred_fallthru
        _
    $region56: #{bernoulli_decoder_logits.1} parent=5 // pred_fallthru
      _
  $region6: #{bernoulli_decoder_logits.1} parent=0 // loop_footer
    %s17 = sadd.s32 1, %s13
  $region7: #{bernoulli_decoder_logits.1} parent=0 // loop_footer_branch
    %12 = sbr.rel target = $region3
  $region8: #{bernoulli_decoder_logits.1} parent=0 // loop_exit
    _

</llo_original>
